<compile_context>
chip_gen: v6e
topology: v6e:2x2x1
jax: 0.10.0
libtpu: 0.0.40
codegen_flags: <defaults>
</compile_context>

<pallas_src>
import functools

import jax
import jax.numpy as jnp
from jax import lax
from jax.experimental import pallas as pl
from jax.experimental.pallas import tpu as pltpu


# -----------------------------------------------------------------------------
# Fused MHA kernel body: one (batch, q-tile) grid point; all heads in-kernel.
# -----------------------------------------------------------------------------
def _mha_body(q_ref, k_ref, v_ref, bias_ref,
              wq_ref, wk_ref, wv_ref, wfc_ref, g_ref, b_ref,
              o_ref, a_ref, ctx_ref, *, n_head, d_k, d_v, eps, exact_softmax):
    f32 = jnp.float32
    bf16 = jnp.bfloat16

    xq = q_ref[0]                                   # (TQ, d_model) bf16 (also residual)
    xk = k_ref[0]                                   # (Lk, d_model) bf16
    xv = v_ref[0]                                   # (Lk, d_model) bf16
    bias = bias_ref[0].astype(f32)                  # (TQ, Lk) additive mask bias

    # Fused QKV projections: bf16 x bf16 -> f32 accumulation on the MXU.
    # (w_q already carries the 1/temperature scale.)
    qp = jnp.dot(xq, wq_ref[...], preferred_element_type=f32).astype(bf16)  # (TQ, H*d_k)
    kp = jnp.dot(xk, wk_ref[...], preferred_element_type=f32).astype(bf16)  # (Lk, H*d_k)
    vp = jnp.dot(xv, wv_ref[...], preferred_element_type=f32).astype(bf16)  # (Lk, H*d_v)

    # Per-head attention.  Heads stay in-kernel; each head's context is written into
    # one lane-dense (TQ, H*d_v) VMEM scratch so the output projection is a single wide
    # matmul.  Static unroll: n_head is small and the scratch offsets must be static.
    dn_qkt = (((1,), (1,)), ((), ()))               # contract d_k of both operands (A @ B^T)
    for h in range(n_head):
        qh = qp[:, h * d_k:(h + 1) * d_k]           # (TQ, d_k)
        kh = kp[:, h * d_k:(h + 1) * d_k]           # (Lk, d_k)
        vh = vp[:, h * d_v:(h + 1) * d_v]           # (Lk, d_v)

        s = lax.dot_general(qh, kh, dn_qkt, preferred_element_type=f32) + bias
        # Numerically stable softmax along keys (f32 vector math).
        s = s - jnp.max(s, axis=-1, keepdims=True)
        e = jnp.exp(s)
        denom = jnp.sum(e, axis=-1, keepdims=True)
        if exact_softmax:
            attn = e / denom                        # returned weights sum to 1 exactly
        else:
            attn = e * pl.reciprocal(denom, approx=True)   # EUP slot, effectively free

        if a_ref is not None:
            a_ref[0, h] = attn.astype(a_ref.dtype)

        ctx_h = jnp.dot(attn.astype(bf16), vh, preferred_element_type=f32)   # (TQ, d_v)
        ctx_ref[:, h * d_v:(h + 1) * d_v] = ctx_h.astype(bf16)

    # Single wide output projection: (TQ, H*d_v) x (H*d_v, d_model), bf16 operands.
    y = jnp.dot(ctx_ref[...], wfc_ref[...], preferred_element_type=f32)      # (TQ, d_model)

    # dropout = identity (inference); residual add + LayerNorm(eps) in f32.
    y = y + xq.astype(f32)
    mean = jnp.mean(y, axis=-1, keepdims=True)
    var = jnp.mean(jnp.square(y - mean), axis=-1, keepdims=True)
    y = (y - mean) * lax.rsqrt(var + eps)
    o_ref[0] = (y * g_ref[0].astype(f32) + b_ref[0].astype(f32)).astype(o_ref.dtype)


def _mha_kernel_with_attn(q_ref, k_ref, v_ref, bias_ref, wq_ref, wk_ref, wv_ref,
                          wfc_ref, g_ref, b_ref, o_ref, a_ref, ctx_ref,
                          *, n_head, d_k, d_v, eps, exact_softmax):
    _mha_body(q_ref, k_ref, v_ref, bias_ref, wq_ref, wk_ref, wv_ref, wfc_ref,
              g_ref, b_ref, o_ref, a_ref, ctx_ref,
              n_head=n_head, d_k=d_k, d_v=d_v, eps=eps, exact_softmax=exact_softmax)


def _mha_kernel_no_attn(q_ref, k_ref, v_ref, bias_ref, wq_ref, wk_ref, wv_ref,
                        wfc_ref, g_ref, b_ref, o_ref, ctx_ref,
                        *, n_head, d_k, d_v, eps, exact_softmax):
    _mha_body(q_ref, k_ref, v_ref, bias_ref, wq_ref, wk_ref, wv_ref, wfc_ref,
              g_ref, b_ref, o_ref, None, ctx_ref,
              n_head=n_head, d_k=d_k, d_v=d_v, eps=eps, exact_softmax=exact_softmax)


def _choose_block_q(len_q):
    """Largest convenient Lq tile (multiple of 8 or the full length)."""
    if len_q <= 512:
        return len_q
    for cand in (512, 256, 128, 64, 32, 16, 8):
        if len_q % cand == 0:
            return cand
    return len_q


# -----------------------------------------------------------------------------
# MultiHeadAttention forward (thin JAX wrapper around the single fused kernel)
# -----------------------------------------------------------------------------
def multi_head_attention(q, k, v, params, mask=None, *, n_head, d_k, d_v,
                         return_attn=True, eps=1e-6):
    B, len_q, d_model = q.shape
    len_k = k.shape[1]

    # Fold 1/temperature (= d_k**-0.5) into the query projection weight once, outside
    # the kernel; all MXU operands in bf16, LayerNorm params stay f32.
    inv_temp = 1.0 / (float(d_k) ** 0.5)
    w_q = (params["w_qs"] * jnp.float32(inv_temp)).astype(jnp.bfloat16)
    w_k = params["w_ks"].astype(jnp.bfloat16)
    w_v = params["w_vs"].astype(jnp.bfloat16)
    w_fc = params["w_fc"].astype(jnp.bfloat16)
    gamma = params["ln_gamma"].reshape(1, d_model).astype(jnp.float32)
    beta = params["ln_beta"].reshape(1, d_model).astype(jnp.float32)

    qb = q.astype(jnp.bfloat16)
    kb = k.astype(jnp.bfloat16)
    vb = v.astype(jnp.bfloat16)

    # Additive mask bias (bf16): 0 keep, -1e9 masked (== masked_fill(mask == 0, -1e9)
    # to within softmax underflow).  Batch dim kept at 1 when the mask is
    # batch-invariant so its block index is constant and the DMA runs only once.
    if mask is None:
        bias = jnp.zeros((1, len_q, len_k), jnp.bfloat16)
    else:
        m = mask if mask.ndim == 3 else mask.reshape((1,) + mask.shape)
        keep = jnp.broadcast_to(m, (m.shape[0], len_q, len_k)) != 0
        bias = jnp.where(keep, 0.0, -1e9).astype(jnp.bfloat16)
    bias_b = bias.shape[0]
    bias_idx = (lambda b, i: (0, i, 0)) if bias_b == 1 else (lambda b, i: (b, i, 0))

    block_q = _choose_block_q(len_q)
    grid = (B, len_q // block_q)

    o_shape = jax.ShapeDtypeStruct((B, len_q, d_model), jnp.float32)
    o_spec = pl.BlockSpec((1, block_q, d_model), lambda b, i: (b, i, 0))
    kernel_kw = dict(n_head=n_head, d_k=d_k, d_v=d_v, eps=eps,
                     exact_softmax=bool(return_attn))
    if return_attn:
        kernel = functools.partial(_mha_kernel_with_attn, **kernel_kw)
        out_shape = (o_shape,
                     jax.ShapeDtypeStruct((B, n_head, len_q, len_k), jnp.float32))
        out_specs = (o_spec,
                     pl.BlockSpec((1, n_head, block_q, len_k),
                                  lambda b, i: (b, 0, i, 0)))
    else:
        kernel = functools.partial(_mha_kernel_no_attn, **kernel_kw)
        out_shape = o_shape
        out_specs = o_spec

    in_specs = [
        pl.BlockSpec((1, block_q, d_model), lambda b, i: (b, i, 0)),     # q (bf16)
        pl.BlockSpec((1, len_k, d_model), lambda b, i: (b, 0, 0)),       # k (bf16)
        pl.BlockSpec((1, len_k, d_model), lambda b, i: (b, 0, 0)),       # v (bf16)
        pl.BlockSpec((1, block_q, len_k), bias_idx),                     # mask bias
        pl.BlockSpec((d_model, n_head * d_k), lambda b, i: (0, 0)),      # w_q (scaled)
        pl.BlockSpec((d_model, n_head * d_k), lambda b, i: (0, 0)),      # w_k
        pl.BlockSpec((d_model, n_head * d_v), lambda b, i: (0, 0)),      # w_v
        pl.BlockSpec((n_head * d_v, d_model), lambda b, i: (0, 0)),      # w_fc
        pl.BlockSpec((1, d_model), lambda b, i: (0, 0)),                 # gamma
        pl.BlockSpec((1, d_model), lambda b, i: (0, 0)),                 # beta
    ]

    result = pl.pallas_call(
        kernel,
        out_shape=out_shape,
        grid_spec=pltpu.PrefetchScalarGridSpec(
            num_scalar_prefetch=0,
            grid=grid,
            in_specs=in_specs,
            out_specs=out_specs,
            scratch_shapes=[pltpu.VMEM((block_q, n_head * d_v), jnp.bfloat16)],
        ),
        compiler_params=pltpu.CompilerParams(
            dimension_semantics=("parallel", "parallel"),
            # ~half of physical VMEM on v5e/v6e; drop toward 32-48 MiB on v7x (64 MiB
            # physical) once the flash-style Lk-streaming path (TODO above) lands.
            vmem_limit_bytes=64 * 1024 * 1024,
        ),
    )(qb, kb, vb, bias, w_q, w_k, w_v, w_fc, gamma, beta)

    if return_attn:
        out, attn = result
        return out, attn
    return result, None


# -----------------------------------------------------------------------------
# Pure-JAX reference (mirrors the PyTorch module, f32) and parameter init
# -----------------------------------------------------------------------------
def mha_reference(q, k, v, params, mask, *, n_head, d_k, d_v, eps=1e-6):
    B, len_q, d_model = q.shape
    len_k = k.shape[1]
    qp = (q @ params["w_qs"]).reshape(B, len_q, n_head, d_k).transpose(0, 2, 1, 3)
    kp = (k @ params["w_ks"]).reshape(B, len_k, n_head, d_k).transpose(0, 2, 1, 3)
    vp = (v @ params["w_vs"]).reshape(B, len_k, n_head, d_v).transpose(0, 2, 1, 3)
    s = jnp.einsum("bhqd,bhkd->bhqk", qp / (float(d_k) ** 0.5), kp)
    if mask is not None:
        m = mask if mask.ndim == 3 else mask.reshape((1,) + mask.shape)
        m = jnp.broadcast_to(m[:, None], (m.shape[0], 1, len_q, len_k))
        s = jnp.where(m == 0, -1e9, s)
    attn = jax.nn.softmax(s, axis=-1)
    ctx = jnp.einsum("bhqk,bhkd->bhqd", attn, vp)
    ctx = ctx.transpose(0, 2, 1, 3).reshape(B, len_q, n_head * d_v)
    y = ctx @ params["w_fc"] + q
    mean = y.mean(-1, keepdims=True)
    var = ((y - mean) ** 2).mean(-1, keepdims=True)
    y = (y - mean) / jnp.sqrt(var + eps)
    return y * params["ln_gamma"] + params["ln_beta"], attn


def init_params(key, d_model, n_head, d_k, d_v):
    ks = jax.random.split(key, 4)
    scale = 0.05
    return {
        "w_qs": scale * jax.random.normal(ks[0], (d_model, n_head * d_k), jnp.float32),
        "w_ks": scale * jax.random.normal(ks[1], (d_model, n_head * d_k), jnp.float32),
        "w_vs": scale * jax.random.normal(ks[2], (d_model, n_head * d_v), jnp.float32),
        "w_fc": scale * jax.random.normal(ks[3], (n_head * d_v, d_model), jnp.float32),
        "ln_gamma": jnp.ones((d_model,), jnp.float32),
        "ln_beta": jnp.zeros((d_model,), jnp.float32),
    }


if __name__ == "__main__":
    # Small, module-consistent shapes.
    B, L, d_model = 2, 8, 32
    n_head, d_k, d_v = 4, 8, 8

    root = jax.random.PRNGKey(0)
    kq, kk, kv, kp = jax.random.split(root, 4)
    q = jax.random.normal(kq, (B, L, d_model), jnp.float32)
    k = jax.random.normal(kk, (B, L, d_model), jnp.float32)
    v = jax.random.normal(kv, (B, L, d_model), jnp.float32)
    params = init_params(kp, d_model, n_head, d_k, d_v)

    # 1) No mask, attention weights returned (matches the PyTorch module signature).
    out, attn = multi_head_attention(
        q, k, v, params, mask=None, n_head=n_head, d_k=d_k, d_v=d_v, return_attn=True
    )
    jax.block_until_ready((out, attn))
    assert out.shape == (B, L, d_model)
    assert attn.shape == (B, n_head, L, L)

    ref_out, ref_attn = mha_reference(q, k, v, params, None,
                                      n_head=n_head, d_k=d_k, d_v=d_v)
    assert jnp.allclose(out, ref_out, atol=5e-2, rtol=5e-2), "output mismatch (no mask)"
    assert jnp.allclose(attn, ref_attn, atol=5e-2, rtol=5e-2), "attn mismatch (no mask)"

    # 2) Causal (decoder-style) mask, attention output skipped (performance path).
    causal = jnp.tril(jnp.ones((L, L), jnp.float32))[None].repeat(B, axis=0)
    out_m, _ = multi_head_attention(
        q, k, v, params, mask=causal, n_head=n_head, d_k=d_k, d_v=d_v,
        return_attn=False,
    )
    jax.block_until_ready(out_m)
    assert out_m.shape == (B, L, d_model)

    ref_out_m, _ = mha_reference(q, k, v, params, causal,
                                 n_head=n_head, d_k=d_k, d_v=d_v)
    assert jnp.allclose(out_m, ref_out_m, atol=5e-2, rtol=5e-2), "output mismatch (masked)"

    print("KERNEL_OK")
</pallas_src>

<mosaic_0001>
module attributes {stable_mosaic.version = 11 : i64} {
  func.func @_mha_kernel_with_attn(%arg0: i32, %arg1: i32, %arg2: memref<1x8x32xbf16, #tpu.memory_space<vmem>>, %arg3: memref<1x8x32xbf16, #tpu.memory_space<vmem>>, %arg4: memref<1x8x32xbf16, #tpu.memory_space<vmem>>, %arg5: memref<1x8x8xbf16, #tpu.memory_space<vmem>>, %arg6: memref<32x32xbf16, #tpu.memory_space<vmem>>, %arg7: memref<32x32xbf16, #tpu.memory_space<vmem>>, %arg8: memref<32x32xbf16, #tpu.memory_space<vmem>>, %arg9: memref<32x32xbf16, #tpu.memory_space<vmem>>, %arg10: memref<1x32xf32, #tpu.memory_space<vmem>>, %arg11: memref<1x32xf32, #tpu.memory_space<vmem>>, %arg12: memref<1x8x32xf32, #tpu.memory_space<vmem>>, %arg13: memref<1x4x8x8xf32, #tpu.memory_space<vmem>>, %arg14: memref<8x32xbf16, #tpu.memory_space<vmem>>) attributes {dimension_semantics = [#tpu.dimension_semantics<parallel>, #tpu.dimension_semantics<parallel>], iteration_bounds = array<i64: 2, 1>, scalar_prefetch = 0 : i64, scratch_operands = 1 : i64, tpu.core_type = #tpu.core_type<tc>, window_params = [{transform_indices = @transform_0, window_bounds = array<i64: 1, 8, 32>}, {transform_indices = @transform_1, window_bounds = array<i64: 1, 8, 32>}, {transform_indices = @transform_2, window_bounds = array<i64: 1, 8, 32>}, {transform_indices = @transform_3, window_bounds = array<i64: 1, 8, 8>}, {pipeline_mode = #tpu.pipeline_mode<synchronous>, transform_indices = @transform_4, window_bounds = array<i64: 32, 32>}, {pipeline_mode = #tpu.pipeline_mode<synchronous>, transform_indices = @transform_5, window_bounds = array<i64: 32, 32>}, {pipeline_mode = #tpu.pipeline_mode<synchronous>, transform_indices = @transform_6, window_bounds = array<i64: 32, 32>}, {pipeline_mode = #tpu.pipeline_mode<synchronous>, transform_indices = @transform_7, window_bounds = array<i64: 32, 32>}, {pipeline_mode = #tpu.pipeline_mode<synchronous>, transform_indices = @transform_8, window_bounds = array<i64: 1, 32>}, {pipeline_mode = #tpu.pipeline_mode<synchronous>, transform_indices = @transform_9, window_bounds = array<i64: 1, 32>}, {transform_indices = @transform_10, window_bounds = array<i64: 1, 8, 32>}, {transform_indices = @transform_11, window_bounds = array<i64: 1, 4, 8, 8>}]} {
    %c0 = arith.constant 0 : index
    %c0_0 = arith.constant 0 : index
    %c0_1 = arith.constant 0 : index
    %0 = vector.load %arg2[%c0, %c0_0, %c0_1] : memref<1x8x32xbf16, #tpu.memory_space<vmem>>, vector<1x8x32xbf16>
    %1 = vector.shape_cast %0 : vector<1x8x32xbf16> to vector<8x32xbf16>
    %c0_2 = arith.constant 0 : index
    %c0_3 = arith.constant 0 : index
    %c0_4 = arith.constant 0 : index
    %2 = vector.load %arg3[%c0_2, %c0_3, %c0_4] : memref<1x8x32xbf16, #tpu.memory_space<vmem>>, vector<1x8x32xbf16>
    %3 = vector.shape_cast %2 : vector<1x8x32xbf16> to vector<8x32xbf16>
    %c0_5 = arith.constant 0 : index
    %c0_6 = arith.constant 0 : index
    %c0_7 = arith.constant 0 : index
    %4 = vector.load %arg4[%c0_5, %c0_6, %c0_7] : memref<1x8x32xbf16, #tpu.memory_space<vmem>>, vector<1x8x32xbf16>
    %5 = vector.shape_cast %4 : vector<1x8x32xbf16> to vector<8x32xbf16>
    %c0_8 = arith.constant 0 : index
    %c0_9 = arith.constant 0 : index
    %c0_10 = arith.constant 0 : index
    %6 = vector.load %arg5[%c0_8, %c0_9, %c0_10] : memref<1x8x8xbf16, #tpu.memory_space<vmem>>, vector<1x8x8xbf16>
    %7 = vector.shape_cast %6 : vector<1x8x8xbf16> to vector<8x8xbf16>
    %8 = arith.extf %7 : vector<8x8xbf16> to vector<8x8xf32>
    %c0_11 = arith.constant 0 : index
    %c0_12 = arith.constant 0 : index
    %9 = vector.load %arg6[%c0_11, %c0_12] : memref<32x32xbf16, #tpu.memory_space<vmem>>, vector<32x32xbf16>
    %cst = arith.constant dense<0.000000e+00> : vector<8x32xf32>
    %10 = tpu.matmul %1, %9, %cst {dimension_numbers = #tpu.dot_dimension_numbers<[1], [0], [0], [1], [0, 0, 1, 1], [], []>} : vector<8x32xbf16>, vector<32x32xbf16>, vector<8x32xf32> -> vector<8x32xf32>
    %11 = arith.truncf %10 : vector<8x32xf32> to vector<8x32xbf16>
    %c0_13 = arith.constant 0 : index
    %c0_14 = arith.constant 0 : index
    %12 = vector.load %arg7[%c0_13, %c0_14] : memref<32x32xbf16, #tpu.memory_space<vmem>>, vector<32x32xbf16>
    %cst_15 = arith.constant dense<0.000000e+00> : vector<8x32xf32>
    %13 = tpu.matmul %3, %12, %cst_15 {dimension_numbers = #tpu.dot_dimension_numbers<[1], [0], [0], [1], [0, 0, 1, 1], [], []>} : vector<8x32xbf16>, vector<32x32xbf16>, vector<8x32xf32> -> vector<8x32xf32>
    %14 = arith.truncf %13 : vector<8x32xf32> to vector<8x32xbf16>
    %c0_16 = arith.constant 0 : index
    %c0_17 = arith.constant 0 : index
    %15 = vector.load %arg8[%c0_16, %c0_17] : memref<32x32xbf16, #tpu.memory_space<vmem>>, vector<32x32xbf16>
    %cst_18 = arith.constant dense<0.000000e+00> : vector<8x32xf32>
    %16 = tpu.matmul %5, %15, %cst_18 {dimension_numbers = #tpu.dot_dimension_numbers<[1], [0], [0], [1], [0, 0, 1, 1], [], []>} : vector<8x32xbf16>, vector<32x32xbf16>, vector<8x32xf32> -> vector<8x32xf32>
    %17 = arith.truncf %16 : vector<8x32xf32> to vector<8x32xbf16>
    %18 = vector.extract_strided_slice %11 {offsets = [0, 0], sizes = [8, 8], strides = [1, 1]} : vector<8x32xbf16> to vector<8x8xbf16>
    %19 = vector.extract_strided_slice %14 {offsets = [0, 0], sizes = [8, 8], strides = [1, 1]} : vector<8x32xbf16> to vector<8x8xbf16>
    %20 = vector.extract_strided_slice %17 {offsets = [0, 0], sizes = [8, 8], strides = [1, 1]} : vector<8x32xbf16> to vector<8x8xbf16>
    %cst_19 = arith.constant dense<0.000000e+00> : vector<8x8xf32>
    %21 = tpu.matmul %18, %19, %cst_19 {dimension_numbers = #tpu.dot_dimension_numbers<[1], [1], [0], [0], [0, 0, 1, 0], [], []>} : vector<8x8xbf16>, vector<8x8xbf16>, vector<8x8xf32> -> vector<8x8xf32>
    %22 = arith.addf %21, %8 : vector<8x8xf32>
    %cst_20 = arith.constant dense<0xFF800000> : vector<8xf32>
    %23 = vector.multi_reduction <maximumf>, %22, %cst_20 [1] : vector<8x8xf32> to vector<8xf32>
    %24 = vector.shape_cast %23 : vector<8xf32> to vector<8x1xf32>
    %25 = vector.broadcast %24 : vector<8x1xf32> to vector<8x8xf32>
    %26 = arith.subf %22, %25 : vector<8x8xf32>
    %27 = math.exp %26 : vector<8x8xf32>
    %cst_21 = arith.constant dense<0.000000e+00> : vector<8xf32>
    %28 = vector.multi_reduction <add>, %27, %cst_21 [1] : vector<8x8xf32> to vector<8xf32>
    %29 = vector.shape_cast %28 : vector<8xf32> to vector<8x1xf32>
    %30 = vector.broadcast %29 : vector<8x1xf32> to vector<8x8xf32>
    %31 = arith.divf %27, %30 : vector<8x8xf32>
    %c0_22 = arith.constant 0 : index
    %c0_23 = arith.constant 0 : index
    %c0_24 = arith.constant 0 : index
    %c0_25 = arith.constant 0 : index
    %32 = vector.load %arg13[%c0_22, %c0_23, %c0_24, %c0_25] : memref<1x4x8x8xf32, #tpu.memory_space<vmem>>, vector<1x1x8x8xf32>
    %33 = vector.shape_cast %32 : vector<1x1x8x8xf32> to vector<8x8xf32>
    %34 = vector.shape_cast %31 : vector<8x8xf32> to vector<1x1x8x8xf32>
    tpu.vector_store %arg13[%c0_22, %c0_23, %c0_24, %c0_25], %34 {strides = array<i32>} : memref<1x4x8x8xf32, #tpu.memory_space<vmem>>, vector<1x1x8x8xf32>,
    %35 = arith.truncf %31 : vector<8x8xf32> to vector<8x8xbf16>
    %cst_26 = arith.constant dense<0.000000e+00> : vector<8x8xf32>
    %36 = tpu.matmul %35, %20, %cst_26 {dimension_numbers = #tpu.dot_dimension_numbers<[1], [0], [0], [1], [0, 0, 1, 1], [], []>} : vector<8x8xbf16>, vector<8x8xbf16>, vector<8x8xf32> -> vector<8x8xf32>
    %37 = arith.truncf %36 : vector<8x8xf32> to vector<8x8xbf16>
    %c0_27 = arith.constant 0 : index
    %c0_28 = arith.constant 0 : index
    %38 = vector.load %arg14[%c0_27, %c0_28] : memref<8x32xbf16, #tpu.memory_space<vmem>>, vector<8x8xbf16>
    tpu.vector_store %arg14[%c0_27, %c0_28], %37 {strides = array<i32>} : memref<8x32xbf16, #tpu.memory_space<vmem>>, vector<8x8xbf16>,
    %39 = vector.extract_strided_slice %11 {offsets = [0, 8], sizes = [8, 8], strides = [1, 1]} : vector<8x32xbf16> to vector<8x8xbf16>
    %40 = vector.extract_strided_slice %14 {offsets = [0, 8], sizes = [8, 8], strides = [1, 1]} : vector<8x32xbf16> to vector<8x8xbf16>
    %41 = vector.extract_strided_slice %17 {offsets = [0, 8], sizes = [8, 8], strides = [1, 1]} : vector<8x32xbf16> to vector<8x8xbf16>
    %cst_29 = arith.constant dense<0.000000e+00> : vector<8x8xf32>
    %42 = tpu.matmul %39, %40, %cst_29 {dimension_numbers = #tpu.dot_dimension_numbers<[1], [1], [0], [0], [0, 0, 1, 0], [], []>} : vector<8x8xbf16>, vector<8x8xbf16>, vector<8x8xf32> -> vector<8x8xf32>
    %43 = arith.addf %42, %8 : vector<8x8xf32>
    %cst_30 = arith.constant dense<0xFF800000> : vector<8xf32>
    %44 = vector.multi_reduction <maximumf>, %43, %cst_30 [1] : vector<8x8xf32> to vector<8xf32>
    %45 = vector.shape_cast %44 : vector<8xf32> to vector<8x1xf32>
    %46 = vector.broadcast %45 : vector<8x1xf32> to vector<8x8xf32>
    %47 = arith.subf %43, %46 : vector<8x8xf32>
    %48 = math.exp %47 : vector<8x8xf32>
    %cst_31 = arith.constant dense<0.000000e+00> : vector<8xf32>
    %49 = vector.multi_reduction <add>, %48, %cst_31 [1] : vector<8x8xf32> to vector<8xf32>
    %50 = vector.shape_cast %49 : vector<8xf32> to vector<8x1xf32>
    %51 = vector.broadcast %50 : vector<8x1xf32> to vector<8x8xf32>
    %52 = arith.divf %48, %51 : vector<8x8xf32>
    %c0_32 = arith.constant 0 : index
    %c1 = arith.constant 1 : index
    %c0_33 = arith.constant 0 : index
    %c0_34 = arith.constant 0 : index
    %53 = vector.load %arg13[%c0_32, %c1, %c0_33, %c0_34] : memref<1x4x8x8xf32, #tpu.memory_space<vmem>>, vector<1x1x8x8xf32>
    %54 = vector.shape_cast %53 : vector<1x1x8x8xf32> to vector<8x8xf32>
    %55 = vector.shape_cast %52 : vector<8x8xf32> to vector<1x1x8x8xf32>
    tpu.vector_store %arg13[%c0_32, %c1, %c0_33, %c0_34], %55 {strides = array<i32>} : memref<1x4x8x8xf32, #tpu.memory_space<vmem>>, vector<1x1x8x8xf32>,
    %56 = arith.truncf %52 : vector<8x8xf32> to vector<8x8xbf16>
    %cst_35 = arith.constant dense<0.000000e+00> : vector<8x8xf32>
    %57 = tpu.matmul %56, %41, %cst_35 {dimension_numbers = #tpu.dot_dimension_numbers<[1], [0], [0], [1], [0, 0, 1, 1], [], []>} : vector<8x8xbf16>, vector<8x8xbf16>, vector<8x8xf32> -> vector<8x8xf32>
    %58 = arith.truncf %57 : vector<8x8xf32> to vector<8x8xbf16>
    %c0_36 = arith.constant 0 : index
    %c8 = arith.constant 8 : index
    %59 = vector.load %arg14[%c0_36, %c8] : memref<8x32xbf16, #tpu.memory_space<vmem>>, vector<8x8xbf16>
    tpu.vector_store %arg14[%c0_36, %c8], %58 {strides = array<i32>} : memref<8x32xbf16, #tpu.memory_space<vmem>>, vector<8x8xbf16>,
    %60 = vector.extract_strided_slice %11 {offsets = [0, 16], sizes = [8, 8], strides = [1, 1]} : vector<8x32xbf16> to vector<8x8xbf16>
    %61 = vector.extract_strided_slice %14 {offsets = [0, 16], sizes = [8, 8], strides = [1, 1]} : vector<8x32xbf16> to vector<8x8xbf16>
    %62 = vector.extract_strided_slice %17 {offsets = [0, 16], sizes = [8, 8], strides = [1, 1]} : vector<8x32xbf16> to vector<8x8xbf16>
    %cst_37 = arith.constant dense<0.000000e+00> : vector<8x8xf32>
    %63 = tpu.matmul %60, %61, %cst_37 {dimension_numbers = #tpu.dot_dimension_numbers<[1], [1], [0], [0], [0, 0, 1, 0], [], []>} : vector<8x8xbf16>, vector<8x8xbf16>, vector<8x8xf32> -> vector<8x8xf32>
    %64 = arith.addf %63, %8 : vector<8x8xf32>
    %cst_38 = arith.constant dense<0xFF800000> : vector<8xf32>
    %65 = vector.multi_reduction <maximumf>, %64, %cst_38 [1] : vector<8x8xf32> to vector<8xf32>
    %66 = vector.shape_cast %65 : vector<8xf32> to vector<8x1xf32>
    %67 = vector.broadcast %66 : vector<8x1xf32> to vector<8x8xf32>
    %68 = arith.subf %64, %67 : vector<8x8xf32>
    %69 = math.exp %68 : vector<8x8xf32>
    %cst_39 = arith.constant dense<0.000000e+00> : vector<8xf32>
    %70 = vector.multi_reduction <add>, %69, %cst_39 [1] : vector<8x8xf32> to vector<8xf32>
    %71 = vector.shape_cast %70 : vector<8xf32> to vector<8x1xf32>
    %72 = vector.broadcast %71 : vector<8x1xf32> to vector<8x8xf32>
    %73 = arith.divf %69, %72 : vector<8x8xf32>
    %c0_40 = arith.constant 0 : index
    %c2 = arith.constant 2 : index
    %c0_41 = arith.constant 0 : index
    %c0_42 = arith.constant 0 : index
    %74 = vector.load %arg13[%c0_40, %c2, %c0_41, %c0_42] : memref<1x4x8x8xf32, #tpu.memory_space<vmem>>, vector<1x1x8x8xf32>
    %75 = vector.shape_cast %74 : vector<1x1x8x8xf32> to vector<8x8xf32>
    %76 = vector.shape_cast %73 : vector<8x8xf32> to vector<1x1x8x8xf32>
    tpu.vector_store %arg13[%c0_40, %c2, %c0_41, %c0_42], %76 {strides = array<i32>} : memref<1x4x8x8xf32, #tpu.memory_space<vmem>>, vector<1x1x8x8xf32>,
    %77 = arith.truncf %73 : vector<8x8xf32> to vector<8x8xbf16>
    %cst_43 = arith.constant dense<0.000000e+00> : vector<8x8xf32>
    %78 = tpu.matmul %77, %62, %cst_43 {dimension_numbers = #tpu.dot_dimension_numbers<[1], [0], [0], [1], [0, 0, 1, 1], [], []>} : vector<8x8xbf16>, vector<8x8xbf16>, vector<8x8xf32> -> vector<8x8xf32>
    %79 = arith.truncf %78 : vector<8x8xf32> to vector<8x8xbf16>
    %c0_44 = arith.constant 0 : index
    %c16 = arith.constant 16 : index
    %80 = vector.load %arg14[%c0_44, %c16] : memref<8x32xbf16, #tpu.memory_space<vmem>>, vector<8x8xbf16>
    tpu.vector_store %arg14[%c0_44, %c16], %79 {strides = array<i32>} : memref<8x32xbf16, #tpu.memory_space<vmem>>, vector<8x8xbf16>,
    %81 = vector.extract_strided_slice %11 {offsets = [0, 24], sizes = [8, 8], strides = [1, 1]} : vector<8x32xbf16> to vector<8x8xbf16>
    %82 = vector.extract_strided_slice %14 {offsets = [0, 24], sizes = [8, 8], strides = [1, 1]} : vector<8x32xbf16> to vector<8x8xbf16>
    %83 = vector.extract_strided_slice %17 {offsets = [0, 24], sizes = [8, 8], strides = [1, 1]} : vector<8x32xbf16> to vector<8x8xbf16>
    %cst_45 = arith.constant dense<0.000000e+00> : vector<8x8xf32>
    %84 = tpu.matmul %81, %82, %cst_45 {dimension_numbers = #tpu.dot_dimension_numbers<[1], [1], [0], [0], [0, 0, 1, 0], [], []>} : vector<8x8xbf16>, vector<8x8xbf16>, vector<8x8xf32> -> vector<8x8xf32>
    %85 = arith.addf %84, %8 : vector<8x8xf32>
    %cst_46 = arith.constant dense<0xFF800000> : vector<8xf32>
    %86 = vector.multi_reduction <maximumf>, %85, %cst_46 [1] : vector<8x8xf32> to vector<8xf32>
    %87 = vector.shape_cast %86 : vector<8xf32> to vector<8x1xf32>
    %88 = vector.broadcast %87 : vector<8x1xf32> to vector<8x8xf32>
    %89 = arith.subf %85, %88 : vector<8x8xf32>
    %90 = math.exp %89 : vector<8x8xf32>
    %cst_47 = arith.constant dense<0.000000e+00> : vector<8xf32>
    %91 = vector.multi_reduction <add>, %90, %cst_47 [1] : vector<8x8xf32> to vector<8xf32>
    %92 = vector.shape_cast %91 : vector<8xf32> to vector<8x1xf32>
    %93 = vector.broadcast %92 : vector<8x1xf32> to vector<8x8xf32>
    %94 = arith.divf %90, %93 : vector<8x8xf32>
    %c0_48 = arith.constant 0 : index
    %c3 = arith.constant 3 : index
    %c0_49 = arith.constant 0 : index
    %c0_50 = arith.constant 0 : index
    %95 = vector.load %arg13[%c0_48, %c3, %c0_49, %c0_50] : memref<1x4x8x8xf32, #tpu.memory_space<vmem>>, vector<1x1x8x8xf32>
    %96 = vector.shape_cast %95 : vector<1x1x8x8xf32> to vector<8x8xf32>
    %97 = vector.shape_cast %94 : vector<8x8xf32> to vector<1x1x8x8xf32>
    tpu.vector_store %arg13[%c0_48, %c3, %c0_49, %c0_50], %97 {strides = array<i32>} : memref<1x4x8x8xf32, #tpu.memory_space<vmem>>, vector<1x1x8x8xf32>,
    %98 = arith.truncf %94 : vector<8x8xf32> to vector<8x8xbf16>
    %cst_51 = arith.constant dense<0.000000e+00> : vector<8x8xf32>
    %99 = tpu.matmul %98, %83, %cst_51 {dimension_numbers = #tpu.dot_dimension_numbers<[1], [0], [0], [1], [0, 0, 1, 1], [], []>} : vector<8x8xbf16>, vector<8x8xbf16>, vector<8x8xf32> -> vector<8x8xf32>
    %100 = arith.truncf %99 : vector<8x8xf32> to vector<8x8xbf16>
    %c0_52 = arith.constant 0 : index
    %c24 = arith.constant 24 : index
    %101 = vector.load %arg14[%c0_52, %c24] : memref<8x32xbf16, #tpu.memory_space<vmem>>, vector<8x8xbf16>
    tpu.vector_store %arg14[%c0_52, %c24], %100 {strides = array<i32>} : memref<8x32xbf16, #tpu.memory_space<vmem>>, vector<8x8xbf16>,
    %c0_53 = arith.constant 0 : index
    %c0_54 = arith.constant 0 : index
    %102 = vector.load %arg14[%c0_53, %c0_54] : memref<8x32xbf16, #tpu.memory_space<vmem>>, vector<8x32xbf16>
    %c0_55 = arith.constant 0 : index
    %c0_56 = arith.constant 0 : index
    %103 = vector.load %arg9[%c0_55, %c0_56] : memref<32x32xbf16, #tpu.memory_space<vmem>>, vector<32x32xbf16>
    %cst_57 = arith.constant dense<0.000000e+00> : vector<8x32xf32>
    %104 = tpu.matmul %102, %103, %cst_57 {dimension_numbers = #tpu.dot_dimension_numbers<[1], [0], [0], [1], [0, 0, 1, 1], [], []>} : vector<8x32xbf16>, vector<32x32xbf16>, vector<8x32xf32> -> vector<8x32xf32>
    %105 = arith.extf %1 : vector<8x32xbf16> to vector<8x32xf32>
    %106 = arith.addf %104, %105 : vector<8x32xf32>
    %cst_58 = arith.constant dense<0.000000e+00> : vector<8xf32>
    %107 = vector.multi_reduction <add>, %106, %cst_58 [1] : vector<8x32xf32> to vector<8xf32>
    %108 = vector.shape_cast %107 : vector<8xf32> to vector<8x1xf32>
    %cst_59 = arith.constant 3.200000e+01 : f32
    %109 = vector.broadcast %cst_59 : f32 to vector<8x1xf32>
    %110 = arith.divf %108, %109 : vector<8x1xf32>
    %111 = vector.broadcast %110 : vector<8x1xf32> to vector<8x32xf32>
    %112 = arith.subf %106, %111 : vector<8x32xf32>
    %113 = arith.mulf %112, %112 : vector<8x32xf32>
    %cst_60 = arith.constant dense<0.000000e+00> : vector<8xf32>
    %114 = vector.multi_reduction <add>, %113, %cst_60 [1] : vector<8x32xf32> to vector<8xf32>
    %115 = vector.shape_cast %114 : vector<8xf32> to vector<8x1xf32>
    %cst_61 = arith.constant 3.200000e+01 : f32
    %116 = vector.broadcast %cst_61 : f32 to vector<8x1xf32>
    %117 = arith.divf %115, %116 : vector<8x1xf32>
    %118 = vector.broadcast %110 : vector<8x1xf32> to vector<8x32xf32>
    %119 = arith.subf %106, %118 : vector<8x32xf32>
    %cst_62 = arith.constant 9.99999997E-7 : f32
    %120 = vector.broadcast %cst_62 : f32 to vector<8x1xf32>
    %121 = arith.addf %117, %120 : vector<8x1xf32>
    %122 = math.rsqrt %121 : vector<8x1xf32>
    %123 = vector.broadcast %122 : vector<8x1xf32> to vector<8x32xf32>
    %124 = arith.mulf %119, %123 : vector<8x32xf32>
    %c0_63 = arith.constant 0 : index
    %c0_64 = arith.constant 0 : index
    %125 = vector.load %arg10[%c0_63, %c0_64] : memref<1x32xf32, #tpu.memory_space<vmem>>, vector<1x32xf32>
    %126 = vector.shape_cast %125 : vector<1x32xf32> to vector<32xf32>
    %127 = vector.shape_cast %126 : vector<32xf32> to vector<1x32xf32>
    %128 = vector.broadcast %127 : vector<1x32xf32> to vector<8x32xf32>
    %129 = arith.mulf %124, %128 : vector<8x32xf32>
    %c0_65 = arith.constant 0 : index
    %c0_66 = arith.constant 0 : index
    %130 = vector.load %arg11[%c0_65, %c0_66] : memref<1x32xf32, #tpu.memory_space<vmem>>, vector<1x32xf32>
    %131 = vector.shape_cast %130 : vector<1x32xf32> to vector<32xf32>
    %132 = vector.shape_cast %131 : vector<32xf32> to vector<1x32xf32>
    %133 = vector.broadcast %132 : vector<1x32xf32> to vector<8x32xf32>
    %134 = arith.addf %129, %133 : vector<8x32xf32>
    %c0_67 = arith.constant 0 : index
    %c0_68 = arith.constant 0 : index
    %c0_69 = arith.constant 0 : index
    %135 = vector.load %arg12[%c0_67, %c0_68, %c0_69] : memref<1x8x32xf32, #tpu.memory_space<vmem>>, vector<1x8x32xf32>
    %136 = vector.shape_cast %135 : vector<1x8x32xf32> to vector<8x32xf32>
    %137 = vector.shape_cast %134 : vector<8x32xf32> to vector<1x8x32xf32>
    tpu.vector_store %arg12[%c0_67, %c0_68, %c0_69], %137 {strides = array<i32>} : memref<1x8x32xf32, #tpu.memory_space<vmem>>, vector<1x8x32xf32>,
    return
  }
  func.func @transform_0(%arg0: i32, %arg1: i32) -> (i32, i32, i32) {
    %c0_i32 = arith.constant 0 : i32
    %c0_i32_0 = arith.constant 0 : i32
    return %arg0, %arg1, %c0_i32 : i32, i32, i32
  }
  func.func @transform_1(%arg0: i32, %arg1: i32) -> (i32, i32, i32) {
    %c0_i32 = arith.constant 0 : i32
    %c0_i32_0 = arith.constant 0 : i32
    %c0_i32_1 = arith.constant 0 : i32
    return %arg0, %c0_i32, %c0_i32_0 : i32, i32, i32
  }
  func.func @transform_2(%arg0: i32, %arg1: i32) -> (i32, i32, i32) {
    %c0_i32 = arith.constant 0 : i32
    %c0_i32_0 = arith.constant 0 : i32
    %c0_i32_1 = arith.constant 0 : i32
    return %arg0, %c0_i32, %c0_i32_0 : i32, i32, i32
  }
  func.func @transform_3(%arg0: i32, %arg1: i32) -> (i32, i32, i32) {
    %c0_i32 = arith.constant 0 : i32
    %c0_i32_0 = arith.constant 0 : i32
    %c0_i32_1 = arith.constant 0 : i32
    return %c0_i32, %arg1, %c0_i32_0 : i32, i32, i32
  }
  func.func @transform_4(%arg0: i32, %arg1: i32) -> (i32, i32) {
    %c0_i32 = arith.constant 0 : i32
    %c0_i32_0 = arith.constant 0 : i32
    %c0_i32_1 = arith.constant 0 : i32
    return %c0_i32, %c0_i32_0 : i32, i32
  }
  func.func @transform_5(%arg0: i32, %arg1: i32) -> (i32, i32) {
    %c0_i32 = arith.constant 0 : i32
    %c0_i32_0 = arith.constant 0 : i32
    %c0_i32_1 = arith.constant 0 : i32
    return %c0_i32, %c0_i32_0 : i32, i32
  }
  func.func @transform_6(%arg0: i32, %arg1: i32) -> (i32, i32) {
    %c0_i32 = arith.constant 0 : i32
    %c0_i32_0 = arith.constant 0 : i32
    %c0_i32_1 = arith.constant 0 : i32
    return %c0_i32, %c0_i32_0 : i32, i32
  }
  func.func @transform_7(%arg0: i32, %arg1: i32) -> (i32, i32) {
    %c0_i32 = arith.constant 0 : i32
    %c0_i32_0 = arith.constant 0 : i32
    %c0_i32_1 = arith.constant 0 : i32
    return %c0_i32, %c0_i32_0 : i32, i32
  }
  func.func @transform_8(%arg0: i32, %arg1: i32) -> (i32, i32) {
    %c0_i32 = arith.constant 0 : i32
    %c0_i32_0 = arith.constant 0 : i32
    %c0_i32_1 = arith.constant 0 : i32
    return %c0_i32, %c0_i32_0 : i32, i32
  }
  func.func @transform_9(%arg0: i32, %arg1: i32) -> (i32, i32) {
    %c0_i32 = arith.constant 0 : i32
    %c0_i32_0 = arith.constant 0 : i32
    %c0_i32_1 = arith.constant 0 : i32
    return %c0_i32, %c0_i32_0 : i32, i32
  }
  func.func @transform_10(%arg0: i32, %arg1: i32) -> (i32, i32, i32) {
    %c0_i32 = arith.constant 0 : i32
    %c0_i32_0 = arith.constant 0 : i32
    return %arg0, %arg1, %c0_i32 : i32, i32, i32
  }
  func.func @transform_11(%arg0: i32, %arg1: i32) -> (i32, i32, i32, i32) {
    %c0_i32 = arith.constant 0 : i32
    %c0_i32_0 = arith.constant 0 : i32
    %c0_i32_1 = arith.constant 0 : i32
    return %arg0, %c0_i32, %arg1, %c0_i32_0 : i32, i32, i32, i32
  }
}

</mosaic_0001>

<llo_original>
// kernel: tpu_custom_call.1
$region0: #{tpu_custom_call.1}
  #allocation0 [shape = 'u32[]', space=smem, size = 0x4, offset = 0x4, fixed_abs, tag = 'smem constant byte address 0x4 - core index']
  #allocation1 [shape = 'u32[144,128]{1,0:T(1,128)}', space=vmem, size = 0x12000, scoped, tag = 'internal scratch']
  #allocation2 [shape = 'bf16[8,32]{1,0:T(8,128)(2,1)}', space=vmem, size = 0x800, scoped, tag = 'scratch operand']
  %s0 = inlined_call_operand.hbm [shape: bf16[2,8,32], index: 0, kind: input, shape index: {}]
  %s1 = inlined_call_operand.hbm [shape: bf16[2,8,32], index: 1, kind: input, shape index: {}]
  %s2 = inlined_call_operand.hbm [shape: bf16[2,8,32], index: 2, kind: input, shape index: {}]
  %s3 = inlined_call_operand.vmem [shape: bf16[1,8,8], index: 3, kind: input, shape index: {}]
  %s4 = inlined_call_operand.hbm [shape: bf16[32,32], index: 4, kind: input, shape index: {}]
  %s5 = inlined_call_operand.hbm [shape: bf16[32,32], index: 5, kind: input, shape index: {}]
  %s6 = inlined_call_operand.hbm [shape: bf16[32,32], index: 6, kind: input, shape index: {}]
  %s7 = inlined_call_operand.hbm [shape: bf16[32,32], index: 7, kind: input, shape index: {}]
  %s8 = inlined_call_operand.vmem [shape: f32[1,32], index: 8, kind: input, shape index: {}]
  %s9 = inlined_call_operand.vmem [shape: f32[1,32], index: 9, kind: input, shape index: {}]
  %s10 = inlined_call_operand.hbm [shape: f32[2,8,32], index: 10, kind: output, shape index: {0}]
  %s11 = inlined_call_operand.hbm [shape: f32[2,4,8,8], index: 11, kind: output, shape index: {1}]
  %12 = xla_tuple %s10, %s11
  %s13 = sld [smem:[#allocation0]]
  $region109: #{tpu_custom_call.1} parent=0
    _
  %s15 = ssub.s32 1, %s13
  %s16 = scalar_select 0, %s15, %s13
  $region1: #{tpu_custom_call.1} parent=0
    #allocation3 [shape = 'u8[4096]{0}', space=vmem, size = 0x1000, scoped, tag = 'input window, operand 0']
    #allocation4 [shape = 's32[2]{0}', space=sflag, size = 0x8, scoped, tag = 'scoped memory for tpu_custom_call.1']
    #allocation5 [shape = 's32[2]{0}', space=sflag, size = 0x8, scoped, tag = 'scoped memory for tpu_custom_call.1']
    #allocation6 [shape = 'u8[4096]{0}', space=vmem, size = 0x1000, scoped, tag = 'input window, operand 1']
    #allocation7 [shape = 's32[2]{0}', space=sflag, size = 0x8, scoped, tag = 'scoped memory for tpu_custom_call.1']
    #allocation8 [shape = 'u8[4096]{0}', space=vmem, size = 0x1000, scoped, tag = 'input window, operand 2']
    #allocation9 [shape = 'u8[8192]{0}', space=vmem, size = 0x2000, scoped, tag = 'input window, operand 4, single buffered']
    #allocation10 [shape = 's32[1]{0}', space=sflag, size = 0x4, scoped, tag = 'scoped memory for tpu_custom_call.1']
    #allocation11 [shape = 'u8[8192]{0}', space=vmem, size = 0x2000, scoped, tag = 'input window, operand 5, single buffered']
    #allocation12 [shape = 'u8[8192]{0}', space=vmem, size = 0x2000, scoped, tag = 'input window, operand 6, single buffered']
    #allocation13 [shape = 's32[1]{0}', space=sflag, size = 0x4, scoped, tag = 'scoped memory for tpu_custom_call.1']
    #allocation14 [shape = 'u8[8192]{0}', space=vmem, size = 0x2000, scoped, tag = 'input window, operand 7, single buffered']
    #allocation15 [shape = 'u8[8192]{0}', space=vmem, size = 0x2000, scoped, tag = 'output window, operand 0']
    #allocation16 [shape = 'u8[32768]{0}', space=vmem, size = 0x8000, scoped, tag = 'output window, operand 1']
    #allocation17 [shape = 's32[2]{0}', space=sflag, size = 0x8, scoped, tag = 'scoped memory for tpu_custom_call.1']
    %17 = vsyncpa [#allocation4], 0
    %s18 = scalar_lea.sflag [#allocation4], 1
    %19 = vsyncpa %s18, 0
    %20 = vsyncpa [#allocation7], 0
    %s21 = scalar_lea.sflag [#allocation7], 1
    %22 = vsyncpa %s21, 0
    %23 = vsyncpa [#allocation10], 0
    %24 = vsyncpa [#allocation13], 0
    %25 = vsyncpa [#allocation5], 0
    %s26 = scalar_lea.sflag [#allocation5], 1
    %27 = vsyncpa %s26, 0
    %28 = vsyncpa [#allocation17], 0
    %s29 = scalar_lea.sflag [#allocation17], 1
    %30 = vsyncpa %s29, 0
    loop: start=0, step=1, limit=4
    $region2: #{tpu_custom_call.1} parent=1 // loop_pre_header
      _
    $region3: #{tpu_custom_call.1} parent=1 // loop_header
      %s32 = sphi 0, %s36
      %p33 = scmp.ge.s32.totalorder %s32, 4
      %s39 = sphi 0, %s51
      %s40 = sphi 0, %s47
      %s41 = sphi 0, %s39
      %s42 = sphi 0, %s40
      %s43 = sphi 0, %s41
      %s44 = sphi 0, %s42
      %s56 = sphi 0, %s58
      %s59 = sphi 0, %s56
      %s60 = sphi 0, %s59
      %s76 = sphi 0, %s60
      %s82 = sphi 0, %s84
      %s85 = sphi 0, %s82
      %s86 = sphi 0, %s85
      %s102 = sphi 0, %s86
      %s108 = sphi 0, %s110
      %s111 = sphi 0, %s108
      %s112 = sphi 0, %s111
      %s128 = sphi 0, %s112
      %s134 = sphi 0, %s136
      %s137 = sphi 0, %s134
      %s138 = sphi 0, %s137
      %s154 = sphi 0, %s138
      %s158 = sphi 0, %s158
      %s160 = sphi 0, %s158
      %s161 = sphi 0, %s160
      %s175 = sphi 0, %s161
      %s179 = sphi 0, %s179
      %s181 = sphi 0, %s179
      %s182 = sphi 0, %s181
      %s196 = sphi 0, %s182
      %s200 = sphi 0, %s200
      %s202 = sphi 0, %s200
      %s203 = sphi 0, %s202
      %s217 = sphi 0, %s203
      %s221 = sphi 0, %s221
      %s223 = sphi 0, %s221
      %s224 = sphi 0, %s223
      %s238 = sphi 0, %s224
      %s242 = sphi 0, %s242
      %s244 = sphi 0, %s242
      %s245 = sphi 0, %s244
      %s259 = sphi 0, %s245
      %s263 = sphi 0, %s263
      %s265 = sphi 0, %s263
      %s266 = sphi 0, %s265
      %s280 = sphi 0, %s266
      %s288 = sphi 0, %s290
      %s291 = sphi 0, %s288
      %s292 = sphi 0, %s291
      %s308 = sphi 0, %s292
      %s316 = sphi 0, %s318
      %s319 = sphi 0, %s316
      %s320 = sphi 0, %s319
      %s336 = sphi 0, %s320
    $region4: #{tpu_custom_call.1} parent=1 // loop_header_branch
      %35 = sbr.rel (%p33) target = $region8
    $region5: #{tpu_custom_call.1} parent=1 // loop_body
      %s37 = ssub.s32 %s32, 1
      %s38 = ssub.s32 %s32, 2
      %s45 = sadd.s32 1, %s40
      %p46 = scmp.ge.s32.totalorder %s45, 1
      %s47 = scalar_select %p46, 0, %s45
      %s48 = sadd.s32 1, %s39
      %s49 = scalar_select %p46, %s48, %s39
      %p50 = scmp.ge.s32.totalorder %s49, 2
      %s51 = scalar_select %p50, 0, %s49
      %s52 = ssub.s32 %s39, %s51
      %s53 = ssub.s32 %s40, %s47
      %s54 = sor.u32 %s52, %s53
      %p55 = scmp.eq.s32.totalorder %s54, 0
      %s57 = sadd.s32 %s56, 1
      %s58 = scalar_select %p55, %s56, %s57
      %p61 = pneg %p55
      %p62 = scmp.eq.s32.totalorder %s32, 1
      %p63 = por %p61, %p62
      %p64 = scmp.ne.s32.totalorder %s56, %s59
      %p65 = scmp.eq.s32.totalorder %s32, 0
      %p66 = por %p64, %p65
      %p67 = scmp.ne.s32.totalorder %s56, %s59
      %p68 = scmp.eq.s32.totalorder %s37, 1
      %p69 = por %p67, %p68
      %p70 = scmp.ne.s32.totalorder %s59, %s60
      %p71 = scmp.eq.s32.totalorder %s37, 0
      %p72 = por %p70, %p71
      %p73 = scmp.ne.s32.totalorder %s59, %s60
      %p74 = scmp.eq.s32.totalorder %s38, 1
      %p75 = por %p73, %p74
      %p77 = scmp.ne.s32.totalorder %s60, %s76
      %p78 = scmp.eq.s32.totalorder %s38, 0
      %p79 = por %p77, %p78
      %s80 = ssub.s32 %s39, %s51
      %p81 = scmp.eq.s32.totalorder %s80, 0
      %s83 = sadd.s32 %s82, 1
      %s84 = scalar_select %p81, %s82, %s83
      %p87 = pneg %p81
      %p88 = scmp.eq.s32.totalorder %s32, 1
      %p89 = por %p87, %p88
      %p90 = scmp.ne.s32.totalorder %s82, %s85
      %p91 = scmp.eq.s32.totalorder %s32, 0
      %p92 = por %p90, %p91
      %p93 = scmp.ne.s32.totalorder %s82, %s85
      %p94 = scmp.eq.s32.totalorder %s37, 1
      %p95 = por %p93, %p94
      %p96 = scmp.ne.s32.totalorder %s85, %s86
      %p97 = scmp.eq.s32.totalorder %s37, 0
      %p98 = por %p96, %p97
      %p99 = scmp.ne.s32.totalorder %s85, %s86
      %p100 = scmp.eq.s32.totalorder %s38, 1
      %p101 = por %p99, %p100
      %p103 = scmp.ne.s32.totalorder %s86, %s102
      %p104 = scmp.eq.s32.totalorder %s38, 0
      %p105 = por %p103, %p104
      %s106 = ssub.s32 %s39, %s51
      %p107 = scmp.eq.s32.totalorder %s106, 0
      %s109 = sadd.s32 %s108, 1
      %s110 = scalar_select %p107, %s108, %s109
      %p113 = pneg %p107
      %p114 = scmp.eq.s32.totalorder %s32, 1
      %p115 = por %p113, %p114
      %p116 = scmp.ne.s32.totalorder %s108, %s111
      %p117 = scmp.eq.s32.totalorder %s32, 0
      %p118 = por %p116, %p117
      %p119 = scmp.ne.s32.totalorder %s108, %s111
      %p120 = scmp.eq.s32.totalorder %s37, 1
      %p121 = por %p119, %p120
      %p122 = scmp.ne.s32.totalorder %s111, %s112
      %p123 = scmp.eq.s32.totalorder %s37, 0
      %p124 = por %p122, %p123
      %p125 = scmp.ne.s32.totalorder %s111, %s112
      %p126 = scmp.eq.s32.totalorder %s38, 1
      %p127 = por %p125, %p126
      %p129 = scmp.ne.s32.totalorder %s112, %s128
      %p130 = scmp.eq.s32.totalorder %s38, 0
      %p131 = por %p129, %p130
      %s132 = ssub.s32 %s40, %s47
      %p133 = scmp.eq.s32.totalorder %s132, 0
      %s135 = sadd.s32 %s134, 1
      %s136 = scalar_select %p133, %s134, %s135
      %p139 = pneg %p133
      %p140 = scmp.eq.s32.totalorder %s32, 1
      %p141 = por %p139, %p140
      %p142 = scmp.ne.s32.totalorder %s134, %s137
      %p143 = scmp.eq.s32.totalorder %s32, 0
      %p144 = por %p142, %p143
      %p145 = scmp.ne.s32.totalorder %s134, %s137
      %p146 = scmp.eq.s32.totalorder %s37, 1
      %p147 = por %p145, %p146
      %p148 = scmp.ne.s32.totalorder %s137, %s138
      %p149 = scmp.eq.s32.totalorder %s37, 0
      %p150 = por %p148, %p149
      %p151 = scmp.ne.s32.totalorder %s137, %s138
      %p152 = scmp.eq.s32.totalorder %s38, 1
      %p153 = por %p151, %p152
      %p155 = scmp.ne.s32.totalorder %s138, %s154
      %p156 = scmp.eq.s32.totalorder %s38, 0
      %p157 = por %p155, %p156
      %s159 = sadd.s32 %s158, 1
      %p162 = scmp.eq.s32.totalorder %s32, 1
      %p163 = scmp.ne.s32.totalorder %s158, %s160
      %p164 = scmp.eq.s32.totalorder %s32, 0
      %p165 = por %p163, %p164
      %p166 = scmp.ne.s32.totalorder %s158, %s160
      %p167 = scmp.eq.s32.totalorder %s37, 1
      %p168 = por %p166, %p167
      %p169 = scmp.ne.s32.totalorder %s160, %s161
      %p170 = scmp.eq.s32.totalorder %s37, 0
      %p171 = por %p169, %p170
      %p172 = scmp.ne.s32.totalorder %s160, %s161
      %p173 = scmp.eq.s32.totalorder %s38, 1
      %p174 = por %p172, %p173
      %p176 = scmp.ne.s32.totalorder %s161, %s175
      %p177 = scmp.eq.s32.totalorder %s38, 0
      %p178 = por %p176, %p177
      %s180 = sadd.s32 %s179, 1
      %p183 = scmp.eq.s32.totalorder %s32, 1
      %p184 = scmp.ne.s32.totalorder %s179, %s181
      %p185 = scmp.eq.s32.totalorder %s32, 0
      %p186 = por %p184, %p185
      %p187 = scmp.ne.s32.totalorder %s179, %s181
      %p188 = scmp.eq.s32.totalorder %s37, 1
      %p189 = por %p187, %p188
      %p190 = scmp.ne.s32.totalorder %s181, %s182
      %p191 = scmp.eq.s32.totalorder %s37, 0
      %p192 = por %p190, %p191
      %p193 = scmp.ne.s32.totalorder %s181, %s182
      %p194 = scmp.eq.s32.totalorder %s38, 1
      %p195 = por %p193, %p194
      %p197 = scmp.ne.s32.totalorder %s182, %s196
      %p198 = scmp.eq.s32.totalorder %s38, 0
      %p199 = por %p197, %p198
      %s201 = sadd.s32 %s200, 1
      %p204 = scmp.eq.s32.totalorder %s32, 1
      %p205 = scmp.ne.s32.totalorder %s200, %s202
      %p206 = scmp.eq.s32.totalorder %s32, 0
      %p207 = por %p205, %p206
      %p208 = scmp.ne.s32.totalorder %s200, %s202
      %p209 = scmp.eq.s32.totalorder %s37, 1
      %p210 = por %p208, %p209
      %p211 = scmp.ne.s32.totalorder %s202, %s203
      %p212 = scmp.eq.s32.totalorder %s37, 0
      %p213 = por %p211, %p212
      %p214 = scmp.ne.s32.totalorder %s202, %s203
      %p215 = scmp.eq.s32.totalorder %s38, 1
      %p216 = por %p214, %p215
      %p218 = scmp.ne.s32.totalorder %s203, %s217
      %p219 = scmp.eq.s32.totalorder %s38, 0
      %p220 = por %p218, %p219
      %s222 = sadd.s32 %s221, 1
      %p225 = scmp.eq.s32.totalorder %s32, 1
      %p226 = scmp.ne.s32.totalorder %s221, %s223
      %p227 = scmp.eq.s32.totalorder %s32, 0
      %p228 = por %p226, %p227
      %p229 = scmp.ne.s32.totalorder %s221, %s223
      %p230 = scmp.eq.s32.totalorder %s37, 1
      %p231 = por %p229, %p230
      %p232 = scmp.ne.s32.totalorder %s223, %s224
      %p233 = scmp.eq.s32.totalorder %s37, 0
      %p234 = por %p232, %p233
      %p235 = scmp.ne.s32.totalorder %s223, %s224
      %p236 = scmp.eq.s32.totalorder %s38, 1
      %p237 = por %p235, %p236
      %p239 = scmp.ne.s32.totalorder %s224, %s238
      %p240 = scmp.eq.s32.totalorder %s38, 0
      %p241 = por %p239, %p240
      %s243 = sadd.s32 %s242, 1
      %p246 = scmp.eq.s32.totalorder %s32, 1
      %p247 = scmp.ne.s32.totalorder %s242, %s244
      %p248 = scmp.eq.s32.totalorder %s32, 0
      %p249 = por %p247, %p248
      %p250 = scmp.ne.s32.totalorder %s242, %s244
      %p251 = scmp.eq.s32.totalorder %s37, 1
      %p252 = por %p250, %p251
      %p253 = scmp.ne.s32.totalorder %s244, %s245
      %p254 = scmp.eq.s32.totalorder %s37, 0
      %p255 = por %p253, %p254
      %p256 = scmp.ne.s32.totalorder %s244, %s245
      %p257 = scmp.eq.s32.totalorder %s38, 1
      %p258 = por %p256, %p257
      %p260 = scmp.ne.s32.totalorder %s245, %s259
      %p261 = scmp.eq.s32.totalorder %s38, 0
      %p262 = por %p260, %p261
      %s264 = sadd.s32 %s263, 1
      %p267 = scmp.eq.s32.totalorder %s32, 1
      %p268 = scmp.ne.s32.totalorder %s263, %s265
      %p269 = scmp.eq.s32.totalorder %s32, 0
      %p270 = por %p268, %p269
      %p271 = scmp.ne.s32.totalorder %s263, %s265
      %p272 = scmp.eq.s32.totalorder %s37, 1
      %p273 = por %p271, %p272
      %p274 = scmp.ne.s32.totalorder %s265, %s266
      %p275 = scmp.eq.s32.totalorder %s37, 0
      %p276 = por %p274, %p275
      %p277 = scmp.ne.s32.totalorder %s265, %s266
      %p278 = scmp.eq.s32.totalorder %s38, 1
      %p279 = por %p277, %p278
      %p281 = scmp.ne.s32.totalorder %s266, %s280
      %p282 = scmp.eq.s32.totalorder %s38, 0
      %p283 = por %p281, %p282
      %s284 = ssub.s32 %s39, %s51
      %s285 = ssub.s32 %s40, %s47
      %s286 = sor.u32 %s284, %s285
      %p287 = scmp.eq.s32.totalorder %s286, 0
      %s289 = sadd.s32 %s288, 1
      %s290 = scalar_select %p287, %s288, %s289
      %p293 = pneg %p287
      %p294 = scmp.eq.s32.totalorder %s32, 1
      %p295 = por %p293, %p294
      %p296 = scmp.ne.s32.totalorder %s288, %s291
      %p297 = scmp.eq.s32.totalorder %s32, 0
      %p298 = por %p296, %p297
      %p299 = scmp.ne.s32.totalorder %s288, %s291
      %p300 = scmp.eq.s32.totalorder %s37, 1
      %p301 = por %p299, %p300
      %p302 = scmp.ne.s32.totalorder %s291, %s292
      %p303 = scmp.eq.s32.totalorder %s37, 0
      %p304 = por %p302, %p303
      %p305 = scmp.ne.s32.totalorder %s291, %s292
      %p306 = scmp.eq.s32.totalorder %s38, 1
      %p307 = por %p305, %p306
      %p309 = scmp.ne.s32.totalorder %s292, %s308
      %p310 = scmp.eq.s32.totalorder %s38, 0
      %p311 = por %p309, %p310
      %s312 = ssub.s32 %s39, %s51
      %s313 = ssub.s32 %s40, %s47
      %s314 = sor.u32 %s312, %s313
      %p315 = scmp.eq.s32.totalorder %s314, 0
      %s317 = sadd.s32 %s316, 1
      %s318 = scalar_select %p315, %s316, %s317
      %p321 = pneg %p315
      %p322 = scmp.eq.s32.totalorder %s32, 1
      %p323 = por %p321, %p322
      %p324 = scmp.ne.s32.totalorder %s316, %s319
      %p325 = scmp.eq.s32.totalorder %s32, 0
      %p326 = por %p324, %p325
      %p327 = scmp.ne.s32.totalorder %s316, %s319
      %p328 = scmp.eq.s32.totalorder %s37, 1
      %p329 = por %p327, %p328
      %p330 = scmp.ne.s32.totalorder %s319, %s320
      %p331 = scmp.eq.s32.totalorder %s37, 0
      %p332 = por %p330, %p331
      %p333 = scmp.ne.s32.totalorder %s319, %s320
      %p334 = scmp.eq.s32.totalorder %s38, 1
      %p335 = por %p333, %p334
      %p337 = scmp.ne.s32.totalorder %s320, %s336
      %p338 = scmp.eq.s32.totalorder %s38, 0
      %p339 = por %p337, %p338
      %p340 = scmp.le.s32.totalorder 1, %s32
      %p341 = scmp.lt.s32.totalorder %s32, 3
      %p342 = pnand %p340, %p341
      %p343 = pneg %p342
      // Predicated region
      $region9: #{tpu_custom_call.1} parent=5 // pred_check
        _
      $region10: #{tpu_custom_call.1} parent=5 // pred_check_branch
        %345 = sbr.rel (%p342) target = $region12
      $region11: #{tpu_custom_call.1} parent=5 // pred_region
        %s346 = ssub.s32 %s32, 1
        // Predicated region
        $region13: #{tpu_custom_call.1} parent=11 // pred_check
          %p347 = pneg %p150
        $region14: #{tpu_custom_call.1} parent=11 // pred_check_branch
          %349 = sbr.rel (%p347) target = $region16
        $region15: #{tpu_custom_call.1} parent=11 // pred_region
          %p350 = scmp.lt.s32.totalorder %s42, 0
          %s351 = scalar_select %p350, %s42, 0
          %s352 = smul.addr %s351, 4
          %s353 = scalar_lea.vmem %s3, %s352
        $region16: #{tpu_custom_call.1} parent=11 // pred_fallthru
          _
        // Predicated region
        $region17: #{tpu_custom_call.1} parent=11 // pred_check
          %p354 = pneg %p171
        $region18: #{tpu_custom_call.1} parent=11 // pred_check_branch
          %356 = sbr.rel (%p354) target = $region20
        $region19: #{tpu_custom_call.1} parent=11 // pred_region
          %s358 = ssub.s32 256, 256
          %359 = vsyncadd [#allocation10], %s358
          %s360 = sshll.u32 [#allocation9], 4
          %s361 = int_to_ptr.vmem [resolvable:$true] %s360
          %366 = dma.hbm_to_vmem [thread:$0]  %s4, 256, %s361, [#allocation10], 64, 64, 4
        $region20: #{tpu_custom_call.1} parent=11 // pred_fallthru
          _
        // Predicated region
        $region21: #{tpu_custom_call.1} parent=11 // pred_check
          %p367 = pneg %p192
        $region22: #{tpu_custom_call.1} parent=11 // pred_check_branch
          %369 = sbr.rel (%p367) target = $region24
        $region23: #{tpu_custom_call.1} parent=11 // pred_region
          %s371 = ssub.s32 256, 256
          %372 = vsyncadd [#allocation10], %s371
          %s373 = sshll.u32 [#allocation11], 4
          %s374 = int_to_ptr.vmem [resolvable:$true] %s373
          %379 = dma.hbm_to_vmem [thread:$0]  %s5, 256, %s374, [#allocation10], 64, 64, 4
        $region24: #{tpu_custom_call.1} parent=11 // pred_fallthru
          _
        // Predicated region
        $region25: #{tpu_custom_call.1} parent=11 // pred_check
          %p380 = pneg %p213
        $region26: #{tpu_custom_call.1} parent=11 // pred_check_branch
          %382 = sbr.rel (%p380) target = $region28
        $region27: #{tpu_custom_call.1} parent=11 // pred_region
          %s384 = ssub.s32 256, 256
          %385 = vsyncadd [#allocation13], %s384
          %s386 = sshll.u32 [#allocation12], 4
          %s387 = int_to_ptr.vmem [resolvable:$true] %s386
          %392 = dma.hbm_to_vmem [thread:$0]  %s6, 256, %s387, [#allocation13], 64, 64, 4
        $region28: #{tpu_custom_call.1} parent=11 // pred_fallthru
          _
        // Predicated region
        $region29: #{tpu_custom_call.1} parent=11 // pred_check
          %p393 = pneg %p234
        $region30: #{tpu_custom_call.1} parent=11 // pred_check_branch
          %395 = sbr.rel (%p393) target = $region32
        $region31: #{tpu_custom_call.1} parent=11 // pred_region
          %s397 = ssub.s32 256, 256
          %398 = vsyncadd [#allocation13], %s397
          %s399 = sshll.u32 [#allocation14], 4
          %s400 = int_to_ptr.vmem [resolvable:$true] %s399
          %405 = dma.hbm_to_vmem [thread:$0]  %s7, 256, %s400, [#allocation13], 64, 64, 4
        $region32: #{tpu_custom_call.1} parent=11 // pred_fallthru
          _
        // Predicated region
        $region33: #{tpu_custom_call.1} parent=11 // pred_check
          %p406 = pneg %p255
        $region34: #{tpu_custom_call.1} parent=11 // pred_check_branch
          %408 = sbr.rel (%p406) target = $region36
        $region35: #{tpu_custom_call.1} parent=11 // pred_region
          _
        $region36: #{tpu_custom_call.1} parent=11 // pred_fallthru
          _
        // Predicated region
        $region37: #{tpu_custom_call.1} parent=11 // pred_check
          %p409 = pneg %p276
        $region38: #{tpu_custom_call.1} parent=11 // pred_check_branch
          %411 = sbr.rel (%p409) target = $region40
        $region39: #{tpu_custom_call.1} parent=11 // pred_region
          _
        $region40: #{tpu_custom_call.1} parent=11 // pred_fallthru
          _
      $region12: #{tpu_custom_call.1} parent=5 // pred_fallthru
        _
      %p412 = scmp.lt.s32.totalorder %s32, 2
      // Predicated region
      $region41: #{tpu_custom_call.1} parent=5 // pred_check
        %p413 = pneg %p412
      $region42: #{tpu_custom_call.1} parent=5 // pred_check_branch
        %415 = sbr.rel (%p413) target = $region44
      $region43: #{tpu_custom_call.1} parent=5 // pred_region
        // Predicated region
        $region45: #{tpu_custom_call.1} parent=43 // pred_check
          %p416 = pneg %p66
        $region46: #{tpu_custom_call.1} parent=43 // pred_check_branch
          %418 = sbr.rel (%p416) target = $region48
        $region47: #{tpu_custom_call.1} parent=43 // pred_region
          %s419 = sand.u32 %s56, 1
          %s420 = scalar_lea.sflag [#allocation4], %s419
          %s421 = sand.u32 %s56, 1
          %s422 = smul.addr %s421, 4
          %s423 = scalar_lea.vmem [#allocation3], %s422
          %s425 = ssub.s32 64, 64
          %426 = vsyncadd %s420, %s425
          %s427 = sadd.s32 %s40, %s39
          %s428 = smul.addr %s427, 64
          %s429 = scalar_lea.hbm %s0, %s428
          %s431 = sshll.u32 %s423, 4
          %s432 = int_to_ptr.vmem [resolvable:$true] %s431
          %434 = dma.hbm_to_vmem [thread:$0]  %s429, 64, %s432, %s420
        $region48: #{tpu_custom_call.1} parent=43 // pred_fallthru
          _
        // Predicated region
        $region49: #{tpu_custom_call.1} parent=43 // pred_check
          %p435 = pneg %p92
        $region50: #{tpu_custom_call.1} parent=43 // pred_check_branch
          %437 = sbr.rel (%p435) target = $region52
        $region51: #{tpu_custom_call.1} parent=43 // pred_region
          %s438 = sand.u32 %s32, 1
          %s439 = scalar_lea.sflag [#allocation7], %s438
          %s440 = sand.u32 %s82, 1
          %s441 = smul.addr %s440, 4
          %s442 = scalar_lea.vmem [#allocation6], %s441
          %s444 = ssub.s32 64, 64
          %445 = vsyncadd %s439, %s444
          %s446 = smul.addr %s39, 64
          %s447 = scalar_lea.hbm %s1, %s446
          %s449 = sshll.u32 %s442, 4
          %s450 = int_to_ptr.vmem [resolvable:$true] %s449
          %452 = dma.hbm_to_vmem [thread:$0]  %s447, 64, %s450, %s439
        $region52: #{tpu_custom_call.1} parent=43 // pred_fallthru
          _
        // Predicated region
        $region53: #{tpu_custom_call.1} parent=43 // pred_check
          %p453 = pneg %p118
        $region54: #{tpu_custom_call.1} parent=43 // pred_check_branch
          %455 = sbr.rel (%p453) target = $region56
        $region55: #{tpu_custom_call.1} parent=43 // pred_region
          %s456 = sand.u32 %s32, 1
          %s457 = scalar_lea.sflag [#allocation7], %s456
          %s458 = sand.u32 %s108, 1
          %s459 = smul.addr %s458, 4
          %s460 = scalar_lea.vmem [#allocation8], %s459
          %s462 = ssub.s32 64, 64
          %463 = vsyncadd %s457, %s462
          %s464 = smul.addr %s39, 64
          %s465 = scalar_lea.hbm %s2, %s464
          %s467 = sshll.u32 %s460, 4
          %s468 = int_to_ptr.vmem [resolvable:$true] %s467
          %470 = dma.hbm_to_vmem [thread:$0]  %s465, 64, %s468, %s457
        $region56: #{tpu_custom_call.1} parent=43 // pred_fallthru
          _
      $region44: #{tpu_custom_call.1} parent=5 // pred_fallthru
        _
      %p471 = scmp.le.s32.totalorder 1, %s32
      %p472 = scmp.lt.s32.totalorder %s32, 3
      %p473 = pnand %p471, %p472
      %p474 = pneg %p473
      // Predicated region
      $region57: #{tpu_custom_call.1} parent=5 // pred_check
        _
      $region58: #{tpu_custom_call.1} parent=5 // pred_check_branch
        %476 = sbr.rel (%p473) target = $region60
      $region59: #{tpu_custom_call.1} parent=5 // pred_region
        %s477 = ssub.s32 %s32, 1
        %s478 = sand.u32 %s59, 1
        %s479 = scalar_lea.sflag [#allocation4], %s478
        %s480 = sand.u32 %s59, 1
        %s481 = smul.addr %s480, 4
        %s482 = scalar_lea.vmem [#allocation3], %s481
        // Predicated region
        $region61: #{tpu_custom_call.1} parent=59 // pred_check
          %p483 = pneg %p72
        $region62: #{tpu_custom_call.1} parent=59 // pred_check_branch
          %485 = sbr.rel (%p483) target = $region64
        $region63: #{tpu_custom_call.1} parent=59 // pred_region
          %486 = dma.done %s479, 64
        $region64: #{tpu_custom_call.1} parent=59 // pred_fallthru
          _
        %s487 = sand.u32 %s37, 1
        %s488 = scalar_lea.sflag [#allocation7], %s487
        %s489 = sand.u32 %s85, 1
        %s490 = smul.addr %s489, 4
        %s491 = scalar_lea.vmem [#allocation6], %s490
        // Predicated region
        $region65: #{tpu_custom_call.1} parent=59 // pred_check
          %p492 = pneg %p98
        $region66: #{tpu_custom_call.1} parent=59 // pred_check_branch
          %494 = sbr.rel (%p492) target = $region68
        $region67: #{tpu_custom_call.1} parent=59 // pred_region
          %495 = dma.done %s488, 64
        $region68: #{tpu_custom_call.1} parent=59 // pred_fallthru
          _
        %s496 = sand.u32 %s37, 1
        %s497 = scalar_lea.sflag [#allocation7], %s496
        %s498 = sand.u32 %s111, 1
        %s499 = smul.addr %s498, 4
        %s500 = scalar_lea.vmem [#allocation8], %s499
        // Predicated region
        $region69: #{tpu_custom_call.1} parent=59 // pred_check
          %p501 = pneg %p124
        $region70: #{tpu_custom_call.1} parent=59 // pred_check_branch
          %503 = sbr.rel (%p501) target = $region72
        $region71: #{tpu_custom_call.1} parent=59 // pred_region
          %504 = dma.done %s497, 64
        $region72: #{tpu_custom_call.1} parent=59 // pred_fallthru
          _
        // Predicated region
        $region73: #{tpu_custom_call.1} parent=59 // pred_check
          %p505 = pneg %p171
        $region74: #{tpu_custom_call.1} parent=59 // pred_check_branch
          %507 = sbr.rel (%p505) target = $region76
        $region75: #{tpu_custom_call.1} parent=59 // pred_region
          %508 = dma.done [#allocation10], 256
        $region76: #{tpu_custom_call.1} parent=59 // pred_fallthru
          _
        // Predicated region
        $region77: #{tpu_custom_call.1} parent=59 // pred_check
          %p509 = pneg %p192
        $region78: #{tpu_custom_call.1} parent=59 // pred_check_branch
          %511 = sbr.rel (%p509) target = $region80
        $region79: #{tpu_custom_call.1} parent=59 // pred_region
          %512 = dma.done [#allocation10], 256
        $region80: #{tpu_custom_call.1} parent=59 // pred_fallthru
          _
        // Predicated region
        $region81: #{tpu_custom_call.1} parent=59 // pred_check
          %p513 = pneg %p213
        $region82: #{tpu_custom_call.1} parent=59 // pred_check_branch
          %515 = sbr.rel (%p513) target = $region84
        $region83: #{tpu_custom_call.1} parent=59 // pred_region
          %516 = dma.done [#allocation13], 256
        $region84: #{tpu_custom_call.1} parent=59 // pred_fallthru
          _
        // Predicated region
        $region85: #{tpu_custom_call.1} parent=59 // pred_check
          %p517 = pneg %p234
        $region86: #{tpu_custom_call.1} parent=59 // pred_check_branch
          %519 = sbr.rel (%p517) target = $region88
        $region87: #{tpu_custom_call.1} parent=59 // pred_region
          %520 = dma.done [#allocation13], 256
        $region88: #{tpu_custom_call.1} parent=59 // pred_fallthru
          _
        %s521 = sand.u32 %s59, 1
        %s522 = scalar_lea.sflag [#allocation4], %s521
        %s523 = sand.u32 %s59, 1
        %s524 = smul.addr %s523, 4
        %s525 = scalar_lea.vmem [#allocation3], %s524
        %p526 = pneg %p72
        %p527 = pneg %p69
        %s528 = sand.u32 %s37, 1
        %s529 = scalar_lea.sflag [#allocation7], %s528
        %s530 = sand.u32 %s85, 1
        %s531 = smul.addr %s530, 4
        %s532 = scalar_lea.vmem [#allocation6], %s531
        %p533 = pneg %p98
        %p534 = pneg %p95
        %s535 = sand.u32 %s37, 1
        %s536 = scalar_lea.sflag [#allocation7], %s535
        %s537 = sand.u32 %s111, 1
        %s538 = smul.addr %s537, 4
        %s539 = scalar_lea.vmem [#allocation8], %s538
        %p540 = pneg %p124
        %p541 = pneg %p121
        %p542 = scmp.lt.s32.totalorder %s42, 0
        %s543 = scalar_select %p542, %s42, 0
        %s544 = smul.addr %s543, 4
        %s545 = scalar_lea.vmem %s3, %s544
        %p546 = pneg %p150
        %p547 = pneg %p147
        %p548 = pneg %p171
        %p549 = pneg %p168
        %p550 = pneg %p192
        %p551 = pneg %p189
        %p552 = pneg %p213
        %p553 = pneg %p210
        %p554 = pneg %p234
        %p555 = pneg %p231
        %p556 = pneg %p255
        %p557 = pneg %p252
        %p558 = pneg %p276
        %p559 = pneg %p273
        %p560 = pneg %p304
        %p561 = pneg %p301
        %s562 = sand.u32 %s291, 1
        %s563 = scalar_lea.sflag [#allocation5], %s562
        %s564 = sand.u32 %s291, 1
        %s565 = smul.addr %s564, 8
        %s566 = scalar_lea.vmem [#allocation15], %s565
        %p567 = pneg %p332
        %p568 = pneg %p329
        %s569 = sand.u32 %s319, 1
        %s570 = scalar_lea.sflag [#allocation17], %s569
        %s571 = sand.u32 %s319, 1
        %s572 = smul.addr %s571, 32
        %s573 = scalar_lea.vmem [#allocation16], %s572
        %p574 = scmp.lt.s32.totalorder %s42, 0
        %s575 = scalar_select %p574, %s42, 0
        %s576 = smul.addr %s575, 4
        %s577 = scalar_lea.vmem %s3, %s576
        %v579 = vld [vmem:[%s482] sm:$0xf]
        %v580 = vld [vmem:[%s491] sm:$0xf]
        %v581 = vld [vmem:[%s500] sm:$0xf]
        %v582 = vld [vmem:[%s577] sm:$0xf]
        %v583 = vunpack.c.l.bf16 %v582
        %v584 = vld [vmem:[#allocation9] sm:$0xf]
        %v585 = vld [vmem:[#allocation9 + $0x4] sm:$0xf]
        %v586 = vld [vmem:[#allocation9 + $0x8] sm:$0xf]
        %v587 = vld [vmem:[#allocation9 + $0xc] sm:$0xf]
        %v592 = vunpack.c.l.b16 %v584
        %v593 = vunpack.c.l.b16 %v585
        %v594 = vunpack.c.l.b16 %v586
        %v595 = vunpack.c.l.b16 %v587
        %v596 = vpack.c.b16 %v593, %v592
        %v597 = vpack.c.b16 %v595, %v594
        %vm600 = vcmask 261120
        %v602 = vsel %vm600, %v579, 0
        %604 = vmatprep.subr.bf16.mxu0 0
        %605 = vmatpush1.bf16.msra.mxu0 0
        %606 = vmatprep.subr.bf16.mxu0 0
        %607 = vmatpush1.bf16.msra.mxu0 0
        %608 = vmatprep.subr.bf16.mxu0 0
        %609 = vmatpush1.bf16.msra.mxu0 0
        %610 = vmatprep.subr.bf16.mxu0 0
        %611 = vmatpush1.bf16.msra.mxu0 0
        %612 = vmatprep.subr.bf16.mxu0 0
        %613 = vmatpush1.bf16.msra.mxu0 0
        %614 = vmatprep.subr.bf16.mxu0 0
        %615 = vmatpush1.bf16.msra.mxu0 0
        %616 = vmatprep.subr.bf16.mxu0 0
        %617 = vmatpush1.bf16.msra.mxu0 %v597
        %618 = vmatprep.subr.bf16.mxu0 0
        %619 = vmatpush1.bf16.msra.mxu0 %v596
        %620 = vmatprep.subr.bf16.mxu0 0
        %621 = vmatpush2.bf16.msra.mxu0 0
        %622 = vmatprep.subr.bf16.mxu0 0
        %623 = vmatpush2.bf16.msra.mxu0 0
        %624 = vmatprep.subr.bf16.mxu0 0
        %625 = vmatpush2.bf16.msra.mxu0 0
        %626 = vmatprep.subr.bf16.mxu0 0
        %627 = vmatpush2.bf16.msra.mxu0 0
        %628 = vmatprep.subr.bf16.mxu0 0
        %629 = vmatpush2.bf16.msra.mxu0 0
        %630 = vmatprep.subr.bf16.mxu0 0
        %631 = vmatpush2.bf16.msra.mxu0 0
        %632 = vmatprep.subr.bf16.mxu0 0
        %633 = vmatpush2.bf16.msra.mxu0 0
        %634 = vmatprep.subr.bf16.mxu0 0
        %635 = vmatpush2.bf16.msra.mxu0 0
        %636 = vmatprep.mubr.bf16.mxu0 0
        %637 = vmatmul.mubr.bf16.gmra.mxu0 %v602
        %v638 = vpop.f32.mrf.mxu0
        %v639 = vadd.f32 0.0, %v638
        %v640 = vpop.f32.mrf.mxu0
        %v641 = vpop.f32.mrf.mxu0
        %v642 = vpop.f32.mrf.mxu0
        %643 = vdwg.mxu0
        %v644 = vpack.c.bf16 %v639, %v639
        %v645 = vld [vmem:[#allocation11] sm:$0xf]
        %v646 = vld [vmem:[#allocation11 + $0x4] sm:$0xf]
        %v647 = vld [vmem:[#allocation11 + $0x8] sm:$0xf]
        %v648 = vld [vmem:[#allocation11 + $0xc] sm:$0xf]
        %v653 = vunpack.c.l.b16 %v645
        %v654 = vunpack.c.l.b16 %v646
        %v655 = vunpack.c.l.b16 %v647
        %v656 = vunpack.c.l.b16 %v648
        %v657 = vpack.c.b16 %v654, %v653
        %v658 = vpack.c.b16 %v656, %v655
        %v662 = vsel %vm600, %v580, 0
        %664 = vmatprep.subr.bf16.mxu0 0
        %665 = vmatpush1.bf16.msra.mxu0 0
        %666 = vmatprep.subr.bf16.mxu0 0
        %667 = vmatpush1.bf16.msra.mxu0 0
        %668 = vmatprep.subr.bf16.mxu0 0
        %669 = vmatpush1.bf16.msra.mxu0 0
        %670 = vmatprep.subr.bf16.mxu0 0
        %671 = vmatpush1.bf16.msra.mxu0 0
        %672 = vmatprep.subr.bf16.mxu0 0
        %673 = vmatpush1.bf16.msra.mxu0 0
        %674 = vmatprep.subr.bf16.mxu0 0
        %675 = vmatpush1.bf16.msra.mxu0 0
        %676 = vmatprep.subr.bf16.mxu0 0
        %677 = vmatpush1.bf16.msra.mxu0 %v658
        %678 = vmatprep.subr.bf16.mxu0 0
        %679 = vmatpush1.bf16.msra.mxu0 %v657
        %680 = vmatprep.subr.bf16.mxu0 0
        %681 = vmatpush2.bf16.msra.mxu0 0
        %682 = vmatprep.subr.bf16.mxu0 0
        %683 = vmatpush2.bf16.msra.mxu0 0
        %684 = vmatprep.subr.bf16.mxu0 0
        %685 = vmatpush2.bf16.msra.mxu0 0
        %686 = vmatprep.subr.bf16.mxu0 0
        %687 = vmatpush2.bf16.msra.mxu0 0
        %688 = vmatprep.subr.bf16.mxu0 0
        %689 = vmatpush2.bf16.msra.mxu0 0
        %690 = vmatprep.subr.bf16.mxu0 0
        %691 = vmatpush2.bf16.msra.mxu0 0
        %692 = vmatprep.subr.bf16.mxu0 0
        %693 = vmatpush2.bf16.msra.mxu0 0
        %694 = vmatprep.subr.bf16.mxu0 0
        %695 = vmatpush2.bf16.msra.mxu0 0
        %696 = vmatprep.mubr.bf16.mxu0 0
        %697 = vmatmul.mubr.bf16.gmra.mxu0 %v662
        %v698 = vpop.f32.mrf.mxu0
        %v699 = vadd.f32 0.0, %v698
        %v700 = vpop.f32.mrf.mxu0
        %v701 = vpop.f32.mrf.mxu0
        %v702 = vpop.f32.mrf.mxu0
        %703 = vdwg.mxu0
        %v704 = vpack.c.bf16 %v699, %v699
        %v705 = vld [vmem:[#allocation12] sm:$0xf]
        %v706 = vld [vmem:[#allocation12 + $0x4] sm:$0xf]
        %v707 = vld [vmem:[#allocation12 + $0x8] sm:$0xf]
        %v708 = vld [vmem:[#allocation12 + $0xc] sm:$0xf]
        %v713 = vunpack.c.l.b16 %v705
        %v714 = vunpack.c.l.b16 %v706
        %v715 = vunpack.c.l.b16 %v707
        %v716 = vunpack.c.l.b16 %v708
        %v717 = vpack.c.b16 %v714, %v713
        %v718 = vpack.c.b16 %v716, %v715
        %v722 = vsel %vm600, %v581, 0
        %724 = vmatprep.subr.bf16.mxu0 0
        %725 = vmatpush1.bf16.msra.mxu0 0
        %726 = vmatprep.subr.bf16.mxu0 0
        %727 = vmatpush1.bf16.msra.mxu0 0
        %728 = vmatprep.subr.bf16.mxu0 0
        %729 = vmatpush1.bf16.msra.mxu0 0
        %730 = vmatprep.subr.bf16.mxu0 0
        %731 = vmatpush1.bf16.msra.mxu0 0
        %732 = vmatprep.subr.bf16.mxu0 0
        %733 = vmatpush1.bf16.msra.mxu0 0
        %734 = vmatprep.subr.bf16.mxu0 0
        %735 = vmatpush1.bf16.msra.mxu0 0
        %736 = vmatprep.subr.bf16.mxu0 0
        %737 = vmatpush1.bf16.msra.mxu0 %v718
        %738 = vmatprep.subr.bf16.mxu0 0
        %739 = vmatpush1.bf16.msra.mxu0 %v717
        %740 = vmatprep.subr.bf16.mxu0 0
        %741 = vmatpush2.bf16.msra.mxu0 0
        %742 = vmatprep.subr.bf16.mxu0 0
        %743 = vmatpush2.bf16.msra.mxu0 0
        %744 = vmatprep.subr.bf16.mxu0 0
        %745 = vmatpush2.bf16.msra.mxu0 0
        %746 = vmatprep.subr.bf16.mxu0 0
        %747 = vmatpush2.bf16.msra.mxu0 0
        %748 = vmatprep.subr.bf16.mxu0 0
        %749 = vmatpush2.bf16.msra.mxu0 0
        %750 = vmatprep.subr.bf16.mxu0 0
        %751 = vmatpush2.bf16.msra.mxu0 0
        %752 = vmatprep.subr.bf16.mxu0 0
        %753 = vmatpush2.bf16.msra.mxu0 0
        %754 = vmatprep.subr.bf16.mxu0 0
        %755 = vmatpush2.bf16.msra.mxu0 0
        %756 = vmatprep.mubr.bf16.mxu0 0
        %757 = vmatmul.mubr.bf16.gmra.mxu0 %v722
        %v758 = vpop.f32.mrf.mxu0
        %v759 = vadd.f32 0.0, %v758
        %v760 = vpop.f32.mrf.mxu0
        %v761 = vpop.f32.mrf.mxu0
        %v762 = vpop.f32.mrf.mxu0
        %763 = vdwg.mxu0
        %v764 = vpack.c.bf16 %v759, %v759
        %vm765 = vcmask 64512
        %v767 = vsel %vm765, %v644, 0
        %v770 = vsel %vm765, %v704, 0
        %772 = vmatprep.subr.bf16.mxu0 0
        %773 = vmatpush1.bf16.xpose.msra.mxu0 0
        %774 = vmatprep.subr.bf16.mxu0 0
        %775 = vmatpush1.bf16.xpose.msra.mxu0 0
        %776 = vmatprep.subr.bf16.mxu0 0
        %777 = vmatpush1.bf16.xpose.msra.mxu0 0
        %778 = vmatprep.subr.bf16.mxu0 0
        %779 = vmatpush1.bf16.xpose.msra.mxu0 0
        %780 = vmatprep.subr.bf16.mxu0 0
        %781 = vmatpush1.bf16.xpose.msra.mxu0 0
        %782 = vmatprep.subr.bf16.mxu0 0
        %783 = vmatpush1.bf16.xpose.msra.mxu0 0
        %784 = vmatprep.subr.bf16.mxu0 0
        %785 = vmatpush1.bf16.xpose.msra.mxu0 0
        %786 = vmatprep.subr.bf16.mxu0 0
        %787 = vmatpush1.bf16.xpose.msra.mxu0 %v770
        %788 = vmatprep.subr.bf16.mxu0 0
        %789 = vmatpush2.bf16.xpose.msra.mxu0 0
        %790 = vmatprep.subr.bf16.mxu0 0
        %791 = vmatpush2.bf16.xpose.msra.mxu0 0
        %792 = vmatprep.subr.bf16.mxu0 0
        %793 = vmatpush2.bf16.xpose.msra.mxu0 0
        %794 = vmatprep.subr.bf16.mxu0 0
        %795 = vmatpush2.bf16.xpose.msra.mxu0 0
        %796 = vmatprep.subr.bf16.mxu0 0
        %797 = vmatpush2.bf16.xpose.msra.mxu0 0
        %798 = vmatprep.subr.bf16.mxu0 0
        %799 = vmatpush2.bf16.xpose.msra.mxu0 0
        %800 = vmatprep.subr.bf16.mxu0 0
        %801 = vmatpush2.bf16.xpose.msra.mxu0 0
        %802 = vmatprep.subr.bf16.mxu0 0
        %803 = vmatpush2.bf16.xpose.msra.mxu0 0
        %804 = vmatprep.mubr.bf16.mxu0 0
        %805 = vmatmul.mubr.bf16.gmra.mxu0 %v767
        %v806 = vpop.f32.mrf.mxu0
        %v807 = vadd.f32 %v583, %v806
        %v808 = vpop.f32.mrf.mxu0
        %v809 = vpop.f32.mrf.mxu0
        %v810 = vpop.f32.mrf.mxu0
        %811 = vdwg.mxu0
        %v812 = vsel %vm765, %v807, -inf
        %813 = vmax.xlane.f32.xlu0 %v812
        %v814 = vpop.xlane.xlu0 %813
        %v815 = vsub.f32 %v807, %v814
        %v816 = vmul.f32 %v815, 1.442695
        %v817 = vpow.pop %v816
        %v818 = vsel %vm765, %v817, 0.0
        %819 = vadd.xlane.f32.xlu0 %v818
        %v820 = vpop.xlane.xlu0 %819
        %v821 = vrcp.pop %v820
        %v822 = vmul.f32 %v817, %v821
        %823 = vst.msk [vmem:[%s573] sm:$0xff] %vm765, %v822
        %v824 = vpack.c.bf16 %v822, %v822
        %v826 = vsel %vm765, %v824, 0
        %vm828 = vcmask 1043456
        %v830 = vsel %vm828, %v764, 0
        %832 = vmatprep.subr.bf16.mxu0 0
        %833 = vmatpush1.bf16.msra.mxu0 0
        %834 = vmatprep.subr.bf16.mxu0 0
        %835 = vmatpush1.bf16.msra.mxu0 0
        %836 = vmatprep.subr.bf16.mxu0 0
        %837 = vmatpush1.bf16.msra.mxu0 0
        %838 = vmatprep.subr.bf16.mxu0 0
        %839 = vmatpush1.bf16.msra.mxu0 0
        %840 = vmatprep.subr.bf16.mxu0 0
        %841 = vmatpush1.bf16.msra.mxu0 0
        %842 = vmatprep.subr.bf16.mxu0 0
        %843 = vmatpush1.bf16.msra.mxu0 0
        %844 = vmatprep.subr.bf16.mxu0 0
        %845 = vmatpush1.bf16.msra.mxu0 0
        %846 = vmatprep.subr.bf16.mxu0 0
        %847 = vmatpush1.bf16.msra.mxu0 %v830
        %848 = vmatprep.subr.bf16.mxu0 0
        %849 = vmatpush2.bf16.msra.mxu0 0
        %850 = vmatprep.subr.bf16.mxu0 0
        %851 = vmatpush2.bf16.msra.mxu0 0
        %852 = vmatprep.subr.bf16.mxu0 0
        %853 = vmatpush2.bf16.msra.mxu0 0
        %854 = vmatprep.subr.bf16.mxu0 0
        %855 = vmatpush2.bf16.msra.mxu0 0
        %856 = vmatprep.subr.bf16.mxu0 0
        %857 = vmatpush2.bf16.msra.mxu0 0
        %858 = vmatprep.subr.bf16.mxu0 0
        %859 = vmatpush2.bf16.msra.mxu0 0
        %860 = vmatprep.subr.bf16.mxu0 0
        %861 = vmatpush2.bf16.msra.mxu0 0
        %862 = vmatprep.subr.bf16.mxu0 0
        %863 = vmatpush2.bf16.msra.mxu0 0
        %864 = vmatprep.mubr.bf16.mxu0 0
        %865 = vmatmul.mubr.bf16.gmra.mxu0 %v826
        %v866 = vpop.f32.mrf.mxu0
        %v867 = vadd.f32 0.0, %v866
        %v868 = vpop.f32.mrf.mxu0
        %v869 = vpop.f32.mrf.mxu0
        %v870 = vpop.f32.mrf.mxu0
        %871 = vdwg.mxu0
        %v872 = vpack.c.bf16 %v867, %v867
        %vm873 = vcmask 60416
        %874 = vst.msk [vmem:[#allocation2] sm:$0xf] %vm873, %v872
        %876 = vrot.lane.b32.xlu0 %v644, 120
        %v877 = vpop.permute.xlu0 %876
        %879 = vrot.lane.b32.xlu0 %v704, 120
        %v880 = vpop.permute.xlu0 %879
        %v882 = vsel %vm765, %v877, 0
        %v885 = vsel %vm765, %v880, 0
        %887 = vmatprep.subr.bf16.mxu0 0
        %888 = vmatpush1.bf16.xpose.msra.mxu0 0
        %889 = vmatprep.subr.bf16.mxu0 0
        %890 = vmatpush1.bf16.xpose.msra.mxu0 0
        %891 = vmatprep.subr.bf16.mxu0 0
        %892 = vmatpush1.bf16.xpose.msra.mxu0 0
        %893 = vmatprep.subr.bf16.mxu0 0
        %894 = vmatpush1.bf16.xpose.msra.mxu0 0
        %895 = vmatprep.subr.bf16.mxu0 0
        %896 = vmatpush1.bf16.xpose.msra.mxu0 0
        %897 = vmatprep.subr.bf16.mxu0 0
        %898 = vmatpush1.bf16.xpose.msra.mxu0 0
        %899 = vmatprep.subr.bf16.mxu0 0
        %900 = vmatpush1.bf16.xpose.msra.mxu0 0
        %901 = vmatprep.subr.bf16.mxu0 0
        %902 = vmatpush1.bf16.xpose.msra.mxu0 %v885
        %903 = vmatprep.subr.bf16.mxu0 0
        %904 = vmatpush2.bf16.xpose.msra.mxu0 0
        %905 = vmatprep.subr.bf16.mxu0 0
        %906 = vmatpush2.bf16.xpose.msra.mxu0 0
        %907 = vmatprep.subr.bf16.mxu0 0
        %908 = vmatpush2.bf16.xpose.msra.mxu0 0
        %909 = vmatprep.subr.bf16.mxu0 0
        %910 = vmatpush2.bf16.xpose.msra.mxu0 0
        %911 = vmatprep.subr.bf16.mxu0 0
        %912 = vmatpush2.bf16.xpose.msra.mxu0 0
        %913 = vmatprep.subr.bf16.mxu0 0
        %914 = vmatpush2.bf16.xpose.msra.mxu0 0
        %915 = vmatprep.subr.bf16.mxu0 0
        %916 = vmatpush2.bf16.xpose.msra.mxu0 0
        %917 = vmatprep.subr.bf16.mxu0 0
        %918 = vmatpush2.bf16.xpose.msra.mxu0 0
        %919 = vmatprep.mubr.bf16.mxu0 0
        %920 = vmatmul.mubr.bf16.gmra.mxu0 %v882
        %v921 = vpop.f32.mrf.mxu0
        %v922 = vadd.f32 %v583, %v921
        %v923 = vpop.f32.mrf.mxu0
        %v924 = vpop.f32.mrf.mxu0
        %v925 = vpop.f32.mrf.mxu0
        %926 = vdwg.mxu0
        %v927 = vsel %vm765, %v922, -inf
        %928 = vmax.xlane.f32.xlu0 %v927
        %v929 = vpop.xlane.xlu0 %928
        %v930 = vsub.f32 %v922, %v929
        %v931 = vmul.f32 %v930, 1.442695
        %v932 = vpow.pop %v931
        %v933 = vsel %vm765, %v932, 0.0
        %934 = vadd.xlane.f32.xlu0 %v933
        %v935 = vpop.xlane.xlu0 %934
        %v936 = vrcp.pop %v935
        %v937 = vmul.f32 %v932, %v936
        %s938 = scalar_lea.vmem %s573, 8 [#allocation16]
        %939 = vst.msk [vmem:[%s938] sm:$0xff] %vm765, %v937
        %v940 = vpack.c.bf16 %v937, %v937
        %942 = vrot.lane.b32.xlu0 %v764, 120
        %v943 = vpop.permute.xlu0 %942
        %v945 = vsel %vm765, %v940, 0
        %v948 = vsel %vm828, %v943, 0
        %950 = vmatprep.subr.bf16.mxu0 0
        %951 = vmatpush1.bf16.msra.mxu0 0
        %952 = vmatprep.subr.bf16.mxu0 0
        %953 = vmatpush1.bf16.msra.mxu0 0
        %954 = vmatprep.subr.bf16.mxu0 0
        %955 = vmatpush1.bf16.msra.mxu0 0
        %956 = vmatprep.subr.bf16.mxu0 0
        %957 = vmatpush1.bf16.msra.mxu0 0
        %958 = vmatprep.subr.bf16.mxu0 0
        %959 = vmatpush1.bf16.msra.mxu0 0
        %960 = vmatprep.subr.bf16.mxu0 0
        %961 = vmatpush1.bf16.msra.mxu0 0
        %962 = vmatprep.subr.bf16.mxu0 0
        %963 = vmatpush1.bf16.msra.mxu0 0
        %964 = vmatprep.subr.bf16.mxu0 0
        %965 = vmatpush1.bf16.msra.mxu0 %v948
        %966 = vmatprep.subr.bf16.mxu0 0
        %967 = vmatpush2.bf16.msra.mxu0 0
        %968 = vmatprep.subr.bf16.mxu0 0
        %969 = vmatpush2.bf16.msra.mxu0 0
        %970 = vmatprep.subr.bf16.mxu0 0
        %971 = vmatpush2.bf16.msra.mxu0 0
        %972 = vmatprep.subr.bf16.mxu0 0
        %973 = vmatpush2.bf16.msra.mxu0 0
        %974 = vmatprep.subr.bf16.mxu0 0
        %975 = vmatpush2.bf16.msra.mxu0 0
        %976 = vmatprep.subr.bf16.mxu0 0
        %977 = vmatpush2.bf16.msra.mxu0 0
        %978 = vmatprep.subr.bf16.mxu0 0
        %979 = vmatpush2.bf16.msra.mxu0 0
        %980 = vmatprep.subr.bf16.mxu0 0
        %981 = vmatpush2.bf16.msra.mxu0 0
        %982 = vmatprep.mubr.bf16.mxu0 0
        %983 = vmatmul.mubr.bf16.gmra.mxu0 %v945
        %v984 = vpop.f32.mrf.mxu0
        %v985 = vadd.f32 0.0, %v984
        %v986 = vpop.f32.mrf.mxu0
        %v987 = vpop.f32.mrf.mxu0
        %v988 = vpop.f32.mrf.mxu0
        %989 = vdwg.mxu0
        %v990 = vpack.c.bf16 %v985, %v985
        %v992 = vunpack.c.l.b16 %v990
        %v993 = vpack.c.b16 %v992, %v992
        %994 = vrot.lane.b32.xlu0 %v993, 8
        %v995 = vpop.permute.xlu0 %994
        %vm997 = vcmask 126016
        %998 = vst.msk [vmem:[#allocation2] sm:$0xf] %vm997, %v995
        %999 = vrot.lane.b32.xlu0 %v644, 112
        %v1000 = vpop.permute.xlu0 %999
        %1001 = vrot.lane.b32.xlu0 %v704, 112
        %v1002 = vpop.permute.xlu0 %1001
        %v1004 = vsel %vm765, %v1000, 0
        %v1007 = vsel %vm765, %v1002, 0
        %1009 = vmatprep.subr.bf16.mxu0 0
        %1010 = vmatpush1.bf16.xpose.msra.mxu0 0
        %1011 = vmatprep.subr.bf16.mxu0 0
        %1012 = vmatpush1.bf16.xpose.msra.mxu0 0
        %1013 = vmatprep.subr.bf16.mxu0 0
        %1014 = vmatpush1.bf16.xpose.msra.mxu0 0
        %1015 = vmatprep.subr.bf16.mxu0 0
        %1016 = vmatpush1.bf16.xpose.msra.mxu0 0
        %1017 = vmatprep.subr.bf16.mxu0 0
        %1018 = vmatpush1.bf16.xpose.msra.mxu0 0
        %1019 = vmatprep.subr.bf16.mxu0 0
        %1020 = vmatpush1.bf16.xpose.msra.mxu0 0
        %1021 = vmatprep.subr.bf16.mxu0 0
        %1022 = vmatpush1.bf16.xpose.msra.mxu0 0
        %1023 = vmatprep.subr.bf16.mxu0 0
        %1024 = vmatpush1.bf16.xpose.msra.mxu0 %v1007
        %1025 = vmatprep.subr.bf16.mxu0 0
        %1026 = vmatpush2.bf16.xpose.msra.mxu0 0
        %1027 = vmatprep.subr.bf16.mxu0 0
        %1028 = vmatpush2.bf16.xpose.msra.mxu0 0
        %1029 = vmatprep.subr.bf16.mxu0 0
        %1030 = vmatpush2.bf16.xpose.msra.mxu0 0
        %1031 = vmatprep.subr.bf16.mxu0 0
        %1032 = vmatpush2.bf16.xpose.msra.mxu0 0
        %1033 = vmatprep.subr.bf16.mxu0 0
        %1034 = vmatpush2.bf16.xpose.msra.mxu0 0
        %1035 = vmatprep.subr.bf16.mxu0 0
        %1036 = vmatpush2.bf16.xpose.msra.mxu0 0
        %1037 = vmatprep.subr.bf16.mxu0 0
        %1038 = vmatpush2.bf16.xpose.msra.mxu0 0
        %1039 = vmatprep.subr.bf16.mxu0 0
        %1040 = vmatpush2.bf16.xpose.msra.mxu0 0
        %1041 = vmatprep.mubr.bf16.mxu0 0
        %1042 = vmatmul.mubr.bf16.gmra.mxu0 %v1004
        %v1043 = vpop.f32.mrf.mxu0
        %v1044 = vadd.f32 %v583, %v1043
        %v1045 = vpop.f32.mrf.mxu0
        %v1046 = vpop.f32.mrf.mxu0
        %v1047 = vpop.f32.mrf.mxu0
        %1048 = vdwg.mxu0
        %v1049 = vsel %vm765, %v1044, -inf
        %1050 = vmax.xlane.f32.xlu0 %v1049
        %v1051 = vpop.xlane.xlu0 %1050
        %v1052 = vsub.f32 %v1044, %v1051
        %v1053 = vmul.f32 %v1052, 1.442695
        %v1054 = vpow.pop %v1053
        %v1055 = vsel %vm765, %v1054, 0.0
        %1056 = vadd.xlane.f32.xlu0 %v1055
        %v1057 = vpop.xlane.xlu0 %1056
        %v1058 = vrcp.pop %v1057
        %v1059 = vmul.f32 %v1054, %v1058
        %s1060 = scalar_lea.vmem %s573, 16 [#allocation16]
        %1061 = vst.msk [vmem:[%s1060] sm:$0xff] %vm765, %v1059
        %v1062 = vpack.c.bf16 %v1059, %v1059
        %1063 = vrot.lane.b32.xlu0 %v764, 112
        %v1064 = vpop.permute.xlu0 %1063
        %v1066 = vsel %vm765, %v1062, 0
        %v1069 = vsel %vm828, %v1064, 0
        %1071 = vmatprep.subr.bf16.mxu0 0
        %1072 = vmatpush1.bf16.msra.mxu0 0
        %1073 = vmatprep.subr.bf16.mxu0 0
        %1074 = vmatpush1.bf16.msra.mxu0 0
        %1075 = vmatprep.subr.bf16.mxu0 0
        %1076 = vmatpush1.bf16.msra.mxu0 0
        %1077 = vmatprep.subr.bf16.mxu0 0
        %1078 = vmatpush1.bf16.msra.mxu0 0
        %1079 = vmatprep.subr.bf16.mxu0 0
        %1080 = vmatpush1.bf16.msra.mxu0 0
        %1081 = vmatprep.subr.bf16.mxu0 0
        %1082 = vmatpush1.bf16.msra.mxu0 0
        %1083 = vmatprep.subr.bf16.mxu0 0
        %1084 = vmatpush1.bf16.msra.mxu0 0
        %1085 = vmatprep.subr.bf16.mxu0 0
        %1086 = vmatpush1.bf16.msra.mxu0 %v1069
        %1087 = vmatprep.subr.bf16.mxu0 0
        %1088 = vmatpush2.bf16.msra.mxu0 0
        %1089 = vmatprep.subr.bf16.mxu0 0
        %1090 = vmatpush2.bf16.msra.mxu0 0
        %1091 = vmatprep.subr.bf16.mxu0 0
        %1092 = vmatpush2.bf16.msra.mxu0 0
        %1093 = vmatprep.subr.bf16.mxu0 0
        %1094 = vmatpush2.bf16.msra.mxu0 0
        %1095 = vmatprep.subr.bf16.mxu0 0
        %1096 = vmatpush2.bf16.msra.mxu0 0
        %1097 = vmatprep.subr.bf16.mxu0 0
        %1098 = vmatpush2.bf16.msra.mxu0 0
        %1099 = vmatprep.subr.bf16.mxu0 0
        %1100 = vmatpush2.bf16.msra.mxu0 0
        %1101 = vmatprep.subr.bf16.mxu0 0
        %1102 = vmatpush2.bf16.msra.mxu0 0
        %1103 = vmatprep.mubr.bf16.mxu0 0
        %1104 = vmatmul.mubr.bf16.gmra.mxu0 %v1066
        %v1105 = vpop.f32.mrf.mxu0
        %v1106 = vadd.f32 0.0, %v1105
        %v1107 = vpop.f32.mrf.mxu0
        %v1108 = vpop.f32.mrf.mxu0
        %v1109 = vpop.f32.mrf.mxu0
        %1110 = vdwg.mxu0
        %v1111 = vpack.c.bf16 %v1106, %v1106
        %v1113 = vunpack.c.l.b16 %v1111
        %v1114 = vpack.c.b16 %v1113, %v1113
        %1115 = vrot.lane.b32.xlu0 %v1114, 16
        %v1116 = vpop.permute.xlu0 %1115
        %vm1118 = vcmask 191616
        %1119 = vst.msk [vmem:[#allocation2] sm:$0xf] %vm1118, %v1116
        %1120 = vrot.lane.b32.xlu0 %v644, 104
        %v1121 = vpop.permute.xlu0 %1120
        %1122 = vrot.lane.b32.xlu0 %v704, 104
        %v1123 = vpop.permute.xlu0 %1122
        %v1125 = vsel %vm765, %v1121, 0
        %v1128 = vsel %vm765, %v1123, 0
        %1130 = vmatprep.subr.bf16.mxu0 0
        %1131 = vmatpush1.bf16.xpose.msra.mxu0 0
        %1132 = vmatprep.subr.bf16.mxu0 0
        %1133 = vmatpush1.bf16.xpose.msra.mxu0 0
        %1134 = vmatprep.subr.bf16.mxu0 0
        %1135 = vmatpush1.bf16.xpose.msra.mxu0 0
        %1136 = vmatprep.subr.bf16.mxu0 0
        %1137 = vmatpush1.bf16.xpose.msra.mxu0 0
        %1138 = vmatprep.subr.bf16.mxu0 0
        %1139 = vmatpush1.bf16.xpose.msra.mxu0 0
        %1140 = vmatprep.subr.bf16.mxu0 0
        %1141 = vmatpush1.bf16.xpose.msra.mxu0 0
        %1142 = vmatprep.subr.bf16.mxu0 0
        %1143 = vmatpush1.bf16.xpose.msra.mxu0 0
        %1144 = vmatprep.subr.bf16.mxu0 0
        %1145 = vmatpush1.bf16.xpose.msra.mxu0 %v1128
        %1146 = vmatprep.subr.bf16.mxu0 0
        %1147 = vmatpush2.bf16.xpose.msra.mxu0 0
        %1148 = vmatprep.subr.bf16.mxu0 0
        %1149 = vmatpush2.bf16.xpose.msra.mxu0 0
        %1150 = vmatprep.subr.bf16.mxu0 0
        %1151 = vmatpush2.bf16.xpose.msra.mxu0 0
        %1152 = vmatprep.subr.bf16.mxu0 0
        %1153 = vmatpush2.bf16.xpose.msra.mxu0 0
        %1154 = vmatprep.subr.bf16.mxu0 0
        %1155 = vmatpush2.bf16.xpose.msra.mxu0 0
        %1156 = vmatprep.subr.bf16.mxu0 0
        %1157 = vmatpush2.bf16.xpose.msra.mxu0 0
        %1158 = vmatprep.subr.bf16.mxu0 0
        %1159 = vmatpush2.bf16.xpose.msra.mxu0 0
        %1160 = vmatprep.subr.bf16.mxu0 0
        %1161 = vmatpush2.bf16.xpose.msra.mxu0 0
        %1162 = vmatprep.mubr.bf16.mxu0 0
        %1163 = vmatmul.mubr.bf16.gmra.mxu0 %v1125
        %v1164 = vpop.f32.mrf.mxu0
        %v1165 = vadd.f32 %v583, %v1164
        %v1166 = vpop.f32.mrf.mxu0
        %v1167 = vpop.f32.mrf.mxu0
        %v1168 = vpop.f32.mrf.mxu0
        %1169 = vdwg.mxu0
        %v1170 = vsel %vm765, %v1165, -inf
        %1171 = vmax.xlane.f32.xlu0 %v1170
        %v1172 = vpop.xlane.xlu0 %1171
        %v1173 = vsub.f32 %v1165, %v1172
        %v1174 = vmul.f32 %v1173, 1.442695
        %v1175 = vpow.pop %v1174
        %v1176 = vsel %vm765, %v1175, 0.0
        %1177 = vadd.xlane.f32.xlu0 %v1176
        %v1178 = vpop.xlane.xlu0 %1177
        %v1179 = vrcp.pop %v1178
        %v1180 = vmul.f32 %v1175, %v1179
        %s1181 = scalar_lea.vmem %s573, 24 [#allocation16]
        %1182 = vst.msk [vmem:[%s1181] sm:$0xff] %vm765, %v1180
        %v1183 = vpack.c.bf16 %v1180, %v1180
        %1184 = vrot.lane.b32.xlu0 %v764, 104
        %v1185 = vpop.permute.xlu0 %1184
        %v1187 = vsel %vm765, %v1183, 0
        %v1190 = vsel %vm828, %v1185, 0
        %1192 = vmatprep.subr.bf16.mxu0 0
        %1193 = vmatpush1.bf16.msra.mxu0 0
        %1194 = vmatprep.subr.bf16.mxu0 0
        %1195 = vmatpush1.bf16.msra.mxu0 0
        %1196 = vmatprep.subr.bf16.mxu0 0
        %1197 = vmatpush1.bf16.msra.mxu0 0
        %1198 = vmatprep.subr.bf16.mxu0 0
        %1199 = vmatpush1.bf16.msra.mxu0 0
        %1200 = vmatprep.subr.bf16.mxu0 0
        %1201 = vmatpush1.bf16.msra.mxu0 0
        %1202 = vmatprep.subr.bf16.mxu0 0
        %1203 = vmatpush1.bf16.msra.mxu0 0
        %1204 = vmatprep.subr.bf16.mxu0 0
        %1205 = vmatpush1.bf16.msra.mxu0 0
        %1206 = vmatprep.subr.bf16.mxu0 0
        %1207 = vmatpush1.bf16.msra.mxu0 %v1190
        %1208 = vmatprep.subr.bf16.mxu0 0
        %1209 = vmatpush2.bf16.msra.mxu0 0
        %1210 = vmatprep.subr.bf16.mxu0 0
        %1211 = vmatpush2.bf16.msra.mxu0 0
        %1212 = vmatprep.subr.bf16.mxu0 0
        %1213 = vmatpush2.bf16.msra.mxu0 0
        %1214 = vmatprep.subr.bf16.mxu0 0
        %1215 = vmatpush2.bf16.msra.mxu0 0
        %1216 = vmatprep.subr.bf16.mxu0 0
        %1217 = vmatpush2.bf16.msra.mxu0 0
        %1218 = vmatprep.subr.bf16.mxu0 0
        %1219 = vmatpush2.bf16.msra.mxu0 0
        %1220 = vmatprep.subr.bf16.mxu0 0
        %1221 = vmatpush2.bf16.msra.mxu0 0
        %1222 = vmatprep.subr.bf16.mxu0 0
        %1223 = vmatpush2.bf16.msra.mxu0 0
        %1224 = vmatprep.mubr.bf16.mxu0 0
        %1225 = vmatmul.mubr.bf16.gmra.mxu0 %v1187
        %v1226 = vpop.f32.mrf.mxu0
        %v1227 = vadd.f32 0.0, %v1226
        %v1228 = vpop.f32.mrf.mxu0
        %v1229 = vpop.f32.mrf.mxu0
        %v1230 = vpop.f32.mrf.mxu0
        %1231 = vdwg.mxu0
        %v1232 = vpack.c.bf16 %v1227, %v1227
        %v1234 = vunpack.c.l.b16 %v1232
        %v1235 = vpack.c.b16 %v1234, %v1234
        %1236 = vrot.lane.b32.xlu0 %v1235, 24
        %v1237 = vpop.permute.xlu0 %1236
        %vm1239 = vcmask 257216
        %1240 = vst.msk [vmem:[#allocation2] sm:$0xf] %vm1239, %v1237
        %v1241 = vld [vmem:[#allocation2] sm:$0xf]
        %v1242 = vld [vmem:[#allocation14] sm:$0xf]
        %v1243 = vld [vmem:[#allocation14 + $0x4] sm:$0xf]
        %v1244 = vld [vmem:[#allocation14 + $0x8] sm:$0xf]
        %v1245 = vld [vmem:[#allocation14 + $0xc] sm:$0xf]
        %v1246 = vunpack.c.l.bf16 %v579
        %v1251 = vunpack.c.l.b16 %v1242
        %v1252 = vunpack.c.l.b16 %v1243
        %v1253 = vunpack.c.l.b16 %v1244
        %v1254 = vunpack.c.l.b16 %v1245
        %v1255 = vpack.c.b16 %v1252, %v1251
        %v1256 = vpack.c.b16 %v1254, %v1253
        %v1260 = vsel %vm600, %v1241, 0
        %1262 = vmatprep.subr.bf16.mxu0 0
        %1263 = vmatpush1.bf16.msra.mxu0 0
        %1264 = vmatprep.subr.bf16.mxu0 0
        %1265 = vmatpush1.bf16.msra.mxu0 0
        %1266 = vmatprep.subr.bf16.mxu0 0
        %1267 = vmatpush1.bf16.msra.mxu0 0
        %1268 = vmatprep.subr.bf16.mxu0 0
        %1269 = vmatpush1.bf16.msra.mxu0 0
        %1270 = vmatprep.subr.bf16.mxu0 0
        %1271 = vmatpush1.bf16.msra.mxu0 0
        %1272 = vmatprep.subr.bf16.mxu0 0
        %1273 = vmatpush1.bf16.msra.mxu0 0
        %1274 = vmatprep.subr.bf16.mxu0 0
        %1275 = vmatpush1.bf16.msra.mxu0 %v1256
        %1276 = vmatprep.subr.bf16.mxu0 0
        %1277 = vmatpush1.bf16.msra.mxu0 %v1255
        %1278 = vmatprep.subr.bf16.mxu0 0
        %1279 = vmatpush2.bf16.msra.mxu0 0
        %1280 = vmatprep.subr.bf16.mxu0 0
        %1281 = vmatpush2.bf16.msra.mxu0 0
        %1282 = vmatprep.subr.bf16.mxu0 0
        %1283 = vmatpush2.bf16.msra.mxu0 0
        %1284 = vmatprep.subr.bf16.mxu0 0
        %1285 = vmatpush2.bf16.msra.mxu0 0
        %1286 = vmatprep.subr.bf16.mxu0 0
        %1287 = vmatpush2.bf16.msra.mxu0 0
        %1288 = vmatprep.subr.bf16.mxu0 0
        %1289 = vmatpush2.bf16.msra.mxu0 0
        %1290 = vmatprep.subr.bf16.mxu0 0
        %1291 = vmatpush2.bf16.msra.mxu0 0
        %1292 = vmatprep.subr.bf16.mxu0 0
        %1293 = vmatpush2.bf16.msra.mxu0 0
        %1294 = vmatprep.mubr.bf16.mxu0 0
        %1295 = vmatmul.mubr.bf16.gmra.mxu0 %v1260
        %v1296 = vpop.f32.mrf.mxu0
        %v1297 = vadd.f32 %v1246, %v1296
        %v1298 = vpop.f32.mrf.mxu0
        %v1299 = vpop.f32.mrf.mxu0
        %v1300 = vpop.f32.mrf.mxu0
        %1301 = vdwg.mxu0
        %v1302 = vsel %vm600, %v1297, 0.0
        %1303 = vadd.xlane.f32.xlu0 %v1302
        %v1304 = vpop.xlane.xlu0 %1303
        %v1305 = vrcp.pop 32.0
        %v1306 = vmul.f32 %v1304, %v1305
        %v1307 = vsub.f32 %v1297, %v1306
        %v1308 = vmul.f32 %v1307, %v1307
        %v1309 = vsel %vm600, %v1308, 0.0
        %1310 = vadd.xlane.f32.xlu0 %v1309
        %v1311 = vpop.xlane.xlu0 %1310
        %v1312 = vmul.f32 %v1311, %v1305
        %v1313 = vadd.f32 %v1312, 1e-06
        %v1314 = vrsqrt.pop %v1313
        %v1315 = vmul.f32 %v1307, %v1314
        %v1316 = vld [vmem:[%s8] sm:$0x1]
        %v1318 = vlaneseq
        %v1319 = vshrl.u32 %v1318, 7
        %v1320 = vsub.s32 0, %v1319
        %v1321 = vrot.slane %v1316, %v1320
        %v1323 = vmul.f32 %v1315, %v1321
        %v1324 = vld [vmem:[%s9] sm:$0x1]
        %v1326 = vlaneseq
        %v1327 = vshrl.u32 %v1326, 7
        %v1328 = vsub.s32 0, %v1327
        %v1329 = vrot.slane %v1324, %v1328
        %v1331 = vadd.f32 %v1323, %v1329
        %1332 = vst.msk [vmem:[%s566] sm:$0xff] %vm600, %v1331
        %s1333 = sand.u32 %s291, 1
        %s1334 = scalar_lea.sflag [#allocation5], %s1333
        %s1335 = sand.u32 %s291, 1
        %s1336 = smul.addr %s1335, 8
        %s1337 = scalar_lea.vmem [#allocation15], %s1336
        %s1338 = sand.u32 %s319, 1
        %s1339 = scalar_lea.sflag [#allocation17], %s1338
        %s1340 = sand.u32 %s319, 1
        %s1341 = smul.addr %s1340, 32
        %s1342 = scalar_lea.vmem [#allocation16], %s1341
        // Predicated region
        $region89: #{tpu_custom_call.1} parent=59 // pred_check
          %p1343 = pneg %p301
        $region90: #{tpu_custom_call.1} parent=59 // pred_check_branch
          %1345 = sbr.rel (%p1343) target = $region92
        $region91: #{tpu_custom_call.1} parent=59 // pred_region
          %s1347 = ssub.s32 128, 128
          %1348 = vsyncadd %s1334, %s1347
          %s1349 = sadd.s32 %s42, %s41
          %s1350 = smul.addr %s1349, 128
          %s1351 = scalar_lea.hbm %s10, %s1350
          %s1353 = sshll.u32 %s1337, 4
          %s1354 = int_to_ptr.vmem [resolvable:$true] %s1353
          %1356 = dma.vmem_to_hbm [thread:$0]  %s1354, 128, %s1351, %s1334
        $region92: #{tpu_custom_call.1} parent=59 // pred_fallthru
          _
        // Predicated region
        $region93: #{tpu_custom_call.1} parent=59 // pred_check
          %p1357 = pneg %p329
        $region94: #{tpu_custom_call.1} parent=59 // pred_check_branch
          %1359 = sbr.rel (%p1357) target = $region96
        $region95: #{tpu_custom_call.1} parent=59 // pred_region
          %s1361 = ssub.s32 512, 512
          %1362 = vsyncadd %s1339, %s1361
          %s1363 = smul.addr %s41, 4
          %s1364 = sadd.s32 %s42, %s1363
          %s1365 = smul.addr %s1364, 128
          %s1366 = scalar_lea.hbm %s11, %s1365
          %s1367 = sshll.u32 %s1342, 4
          %s1368 = int_to_ptr.vmem [resolvable:$true] %s1367
          %1373 = dma.vmem_to_hbm [thread:$0]  %s1368, 512, %s1366, %s1339, 128, 128, 8
        $region96: #{tpu_custom_call.1} parent=59 // pred_fallthru
          _
      $region60: #{tpu_custom_call.1} parent=5 // pred_fallthru
        _
      %p1374 = scmp.le.s32.totalorder 2, %s32
      // Predicated region
      $region97: #{tpu_custom_call.1} parent=5 // pred_check
        %p1375 = pneg %p1374
      $region98: #{tpu_custom_call.1} parent=5 // pred_check_branch
        %1377 = sbr.rel (%p1375) target = $region100
      $region99: #{tpu_custom_call.1} parent=5 // pred_region
        %s1378 = ssub.s32 %s32, 2
        // Predicated region
        $region101: #{tpu_custom_call.1} parent=99 // pred_check
          %p1379 = pneg %p307
        $region102: #{tpu_custom_call.1} parent=99 // pred_check_branch
          %1381 = sbr.rel (%p1379) target = $region104
        $region103: #{tpu_custom_call.1} parent=99 // pred_region
          %s1382 = sand.u32 %s292, 1
          %s1383 = scalar_lea.sflag [#allocation5], %s1382
          %s1384 = sand.u32 %s292, 1
          %s1385 = smul.addr %s1384, 8
          %s1386 = scalar_lea.vmem [#allocation15], %s1385
          %1387 = dma.done %s1383, 128
        $region104: #{tpu_custom_call.1} parent=99 // pred_fallthru
          _
        // Predicated region
        $region105: #{tpu_custom_call.1} parent=99 // pred_check
          %p1388 = pneg %p335
        $region106: #{tpu_custom_call.1} parent=99 // pred_check_branch
          %1390 = sbr.rel (%p1388) target = $region108
        $region107: #{tpu_custom_call.1} parent=99 // pred_region
          %s1391 = sand.u32 %s320, 1
          %s1392 = scalar_lea.sflag [#allocation17], %s1391
          %s1393 = sand.u32 %s320, 1
          %s1394 = smul.addr %s1393, 32
          %s1395 = scalar_lea.vmem [#allocation16], %s1394
          %1396 = dma.done %s1392, 512
        $region108: #{tpu_custom_call.1} parent=99 // pred_fallthru
          _
      $region100: #{tpu_custom_call.1} parent=5 // pred_fallthru
        _
    $region6: #{tpu_custom_call.1} parent=1 // loop_footer
      %s36 = sadd.s32 1, %s32
    $region7: #{tpu_custom_call.1} parent=1 // loop_footer_branch
      %31 = sbr.rel target = $region3
    $region8: #{tpu_custom_call.1} parent=1 // loop_exit
      _
    %1397 = vsyncpa [#allocation4], 1
    %s1398 = scalar_lea.sflag [#allocation4], 1
    %1399 = vsyncpa %s1398, 1
    %1400 = vsyncpa [#allocation7], 1
    %s1401 = scalar_lea.sflag [#allocation7], 1
    %1402 = vsyncpa %s1401, 1
    %1403 = vsyncpa [#allocation10], 1
    %1404 = vsyncpa [#allocation13], 1
    %1405 = vsyncpa [#allocation5], 1
    %s1406 = scalar_lea.sflag [#allocation5], 1
    %1407 = vsyncpa %s1406, 1
    %1408 = vsyncpa [#allocation17], 1
    %s1409 = scalar_lea.sflag [#allocation17], 1
    %1410 = vsyncpa %s1409, 1

</llo_original>
